<compile_context>
chip_gen: v6e
topology: v6e:2x2x1
jax: 0.10.0
libtpu: 0.0.40
codegen_flags: <defaults>
</compile_context>

<pallas_src>
import math
import numpy as np
import jax
import jax.numpy as jnp
from jax.experimental import pallas as pl
from jax.experimental.pallas import tpu as pltpu

NEG_SLOPE = 0.01      # nn.LeakyReLU default
EDGE_TILE = 512       # edge-chunk size; halve on v5e (smaller scoped VMEM)


def _leaky(h):
    return jnp.where(h > 0, h, NEG_SLOPE * h)


def _ceil_to(x, m):
    return ((int(x) + m - 1) // m) * m


# ---------------------------------------------------------------------------
# Pallas kernel: ALL MGINConv layers fused into one pallas_call.
#   grid = (num_layers, num_edge_chunks), both "arbitrary".
#   x lives in VMEM scratch across the whole grid; neigh accumulates per layer.
# ---------------------------------------------------------------------------
def fused_mgin_kernel(x_hbm, gx_ref, amat_ref, esel_ref, w_ref, b_ref,
                      out_ref, x_scr, neigh_scr, dma_sem):
    l = pl.program_id(0)
    c = pl.program_id(1)
    last_c = pl.num_programs(1) - 1

    # One-time load of node features HBM -> VMEM scratch (single-buffered,
    # resident across all layers / chunks).
    @pl.when(jnp.logical_and(l == 0, c == 0))
    def _():
        cp = pltpu.make_async_copy(x_hbm, x_scr, dma_sem)
        cp.start()
        cp.wait()

    @pl.when(c == 0)
    def _():
        neigh_scr[...] = jnp.zeros_like(neigh_scr)

    # ---- message + scatter-add for this edge chunk (bf16 MXU, f32 accum) ----
    x_bf = x_scr[...].astype(jnp.bfloat16)                                 # [Np, Cp]
    xj = jnp.dot(gx_ref[...], x_bf, preferred_element_type=jnp.float32)    # [TE, Cp]
    msg = jnp.maximum(xj + esel_ref[...].astype(jnp.float32), 0.0)         # relu, f32 VPU
    neigh_scr[...] += jnp.dot(amat_ref[...], msg.astype(jnp.bfloat16),
                              preferred_element_type=jnp.float32)          # [Np, Cp]

    # ---- per-node MLP once all edge chunks of this layer are accumulated ----
    @pl.when(c == last_c)
    def _():
        Cp = x_scr.shape[1]
        Hp = w_ref.shape[1]
        # packed weight slab rows: [W1A | W1B | W2 | W3]  (all bf16)
        w1a = w_ref[0:Cp, :]                       # [Cp, Hp]
        w1b = w_ref[Cp:2 * Cp, :]                  # [Cp, Hp]
        w2 = w_ref[2 * Cp:2 * Cp + Hp, 0:Cp]       # [Hp, Cp]
        w3 = w_ref[2 * Cp + Hp:3 * Cp + Hp, 0:Cp]  # [Cp, Cp]
        b1 = b_ref[0:1, :]                         # [1, Hp]  (f32)
        b2 = b_ref[1:2, 0:Cp]                      # [1, Cp]
        b3 = b_ref[2:3, 0:Cp]                      # [1, Cp]

        xb = x_scr[...].astype(jnp.bfloat16)
        nb = neigh_scr[...].astype(jnp.bfloat16)
        # aggSum(cat([neigh, x], dim=1)) with the concat folded into split W1
        h = (jnp.dot(nb, w1a, preferred_element_type=jnp.float32)
             + jnp.dot(xb, w1b, preferred_element_type=jnp.float32)
             + b1)                                                          # [Np, Hp]
        h = _leaky(h)
        h = jnp.dot(h.astype(jnp.bfloat16), w2,
                    preferred_element_type=jnp.float32) + b2                # [Np, Cp]
        h = _leaky(h)
        h = jnp.dot(h.astype(jnp.bfloat16), w3,
                    preferred_element_type=jnp.float32) + b3                # [Np, Cp]

        x_scr[...] = h      # carry to next layer (resident in VMEM)
        out_ref[...] = h    # resident output block; written back once at grid end


def modified_gin_pallas(x_pad, gx, amat, esel_pad, Wslab, Bslab, edge_tile):
    L, R, Hp = Wslab.shape
    Np, Cp = x_pad.shape
    Ep = gx.shape[0]
    TE = edge_tile
    NC = Ep // TE

    in_specs = [
        pl.BlockSpec(memory_space=pl.ANY),                       # x (HBM; manual DMA once)
        pl.BlockSpec((TE, Np), lambda l, c: (c, 0)),             # one-hot gather chunk (bf16)
        pl.BlockSpec((Np, TE), lambda l, c: (0, c)),             # one-hot scatter chunk (bf16)
        pl.BlockSpec((TE, Cp), lambda l, c: (c, 0)),             # edge-embed chunk (bf16)
        pl.BlockSpec((None, R, Hp), lambda l, c: (l, 0, 0)),     # packed weights (bf16), per layer
        pl.BlockSpec((None, 3, Hp), lambda l, c: (l, 0, 0)),     # packed biases (f32), per layer
    ]
    out_spec = pl.BlockSpec((Np, Cp), lambda l, c: (0, 0))

    # VMEM budget: streamed chunks are double-buffered; x / scratch single.
    est = (2 * (TE * Np * 2) + 2 * (Np * TE * 2) + 2 * (TE * Cp * 2)   # gx / amat / esel chunks
           + 2 * (R * Hp * 2) + 2 * (8 * Hp * 4)                       # weight / bias slabs
           + 2 * (Np * Cp * 4)                                         # output block
           + 2 * (Np * Cp * 4))                                        # x_scr + neigh_scr
    vmem_limit = int(min(128 * 1024 * 1024, max(2 * est, 32 * 1024 * 1024)))

    return pl.pallas_call(
        fused_mgin_kernel,
        grid=(L, NC),
        in_specs=in_specs,
        out_specs=out_spec,
        out_shape=jax.ShapeDtypeStruct((Np, Cp), jnp.float32),
        scratch_shapes=[pltpu.VMEM((Np, Cp), jnp.float32),   # x_scr
                        pltpu.VMEM((Np, Cp), jnp.float32),   # neigh_scr
                        pltpu.SemaphoreType.DMA(())],
        input_output_aliases={0: 0},   # reuse the x_pad HBM buffer for the output
        compiler_params=pltpu.CompilerParams(
            dimension_semantics=("arbitrary", "arbitrary"),
            vmem_limit_bytes=vmem_limit),
    )(x_pad, gx, amat, esel_pad, Wslab, Bslab)


# ---------------------------------------------------------------------------
# Host-side glue: un-pad, exact-integer pair indices, one-hot chunk matrices.
# (Topology products depend only on the graph topology and can be cached.)
# ---------------------------------------------------------------------------
def prepare_graph(node_embeds_pad, edge_embeds_pad, graphs, Cp, edge_tile=EDGE_TILE):
    B = len(graphs)
    n = np.array([g['n'] for g in graphs], dtype=np.int64)
    p = n * (n - 1) // 2
    N = int(n.sum())
    C = node_embeds_pad.shape[-1]
    cutoffs = np.concatenate([[0], np.cumsum(n)]).astype(np.int64)
    pair_cut = np.concatenate([[0], np.cumsum(p)]).astype(np.int64)

    # vectorized unpad_sequence + cat (single gather per tensor)
    gi_n = np.repeat(np.arange(B), n)
    li_n = np.concatenate([np.arange(k) for k in n])
    X = node_embeds_pad[jnp.asarray(gi_n, jnp.int32), jnp.asarray(li_n, jnp.int32)]   # [N, C]
    gi_p = np.repeat(np.arange(B), p)
    li_p = np.concatenate([np.arange(k) for k in p])
    Epair = edge_embeds_pad[jnp.asarray(gi_p, jnp.int32), jnp.asarray(li_p, jnp.int32)]  # [P, C]

    # global (offset) edge index; col 0 = source j (gather), col 1 = target i (scatter)
    edge_index = np.concatenate([np.asarray(g['adj'], np.int64) + cutoffs[i]
                                 for i, g in enumerate(graphs)], axis=0)
    src = edge_index[:, 0]
    dst = edge_index[:, 1]
    E = src.shape[0]

    # exact-integer upper-triangular pair index (mirrors MGINConv.message)
    a = np.minimum(src, dst)
    b = np.maximum(src, dst)
    gidx = np.sum(a[:, None] >= cutoffs[None, 1:], axis=1)
    a_in = a - cutoffs[gidx]
    b_in = b - cutoffs[gidx]
    n_g = n[gidx]
    pair_idx = (a_in * (2 * n_g - a_in - 3)) // 2 + b_in - 1 + pair_cut[gidx]
    # int32 safety for the device-side gather (review concern):
    assert pair_cut[-1] < 2 ** 31, "pair index exceeds int32 range; enable x64 gather"
    esel = Epair[jnp.asarray(pair_idx, jnp.int32)]                      # [E, C]  f32

    # lane-dense padding: node rows to 128, edge rows to an edge-tile multiple
    Np = _ceil_to(max(N, 1), 128)
    Ep = _ceil_to(max(E, 1), 128)
    if Ep > edge_tile:
        Ep = _ceil_to(Ep, edge_tile)
        TE = edge_tile
    else:
        TE = Ep

    gx = np.zeros((Ep, Np), np.float32)
    gx[np.arange(E), src] = 1.0
    amat = np.zeros((Np, Ep), np.float32)
    amat[dst, np.arange(E)] = 1.0

    x_pad = jnp.zeros((Np, Cp), jnp.float32).at[:N, :C].set(X)
    esel_pad = (jnp.zeros((Ep, Cp), jnp.float32).at[:E, :C].set(esel)
                ).astype(jnp.bfloat16)

    return dict(X=X, esel=esel, src=src, dst=dst, N=N, E=E, n=n, cutoffs=cutoffs,
                x_pad=x_pad, esel_pad=esel_pad,
                gx=jnp.asarray(gx, jnp.bfloat16),
                amat=jnp.asarray(amat, jnp.bfloat16),
                Np=Np, Ep=Ep, TE=TE)


def repad(X_flat, n, cutoffs, max_n):
    """Vectorized pad_sequence: one gather + validity mask (re-zeros pad rows)."""
    B = len(n)
    pos = np.arange(max_n)
    idx = cutoffs[:B, None] + pos[None, :]
    valid = pos[None, :] < n[:, None]
    idx = np.where(valid, idx, 0)
    out = jnp.take(X_flat, jnp.asarray(idx, jnp.int32), axis=0)
    return out * jnp.asarray(valid, jnp.float32)[..., None]


def modified_gin_forward(node_embeds_pad, edge_embeds_pad, graphs, packed_params, C):
    Wslab, Bslab = packed_params
    L, R, Hp = Wslab.shape
    Cp = (R - Hp) // 3
    prep = prepare_graph(node_embeds_pad, edge_embeds_pad, graphs, Cp)
    y = modified_gin_pallas(prep['x_pad'], prep['gx'], prep['amat'],
                            prep['esel_pad'], Wslab, Bslab, prep['TE'])
    return repad(y[:, :C], prep['n'], prep['cutoffs'], node_embeds_pad.shape[1])


# pure-JAX f32 reference (true gather + scatter-add) for correctness checking
def reference_forward(node_embeds_pad, edge_embeds_pad, graphs, params):
    C = node_embeds_pad.shape[-1]
    prep = prepare_graph(node_embeds_pad, edge_embeds_pad, graphs, _ceil_to(C, 128))
    X = prep['X']
    src = jnp.asarray(prep['src'].astype(np.int32))
    dst = jnp.asarray(prep['dst'].astype(np.int32))
    esel = prep['esel']
    N = prep['N']
    for (w1a, w1b, b1, w2, b2, w3, b3) in params:
        msg = jnp.maximum(X[src] + esel, 0.0)
        neigh = jnp.zeros((N, C), jnp.float32).at[dst].add(msg)
        h = neigh @ w1a + X @ w1b + b1
        h = _leaky(h)
        h = h @ w2 + b2
        h = _leaky(h)
        h = h @ w3 + b3
        X = h
    return repad(X, prep['n'], prep['cutoffs'], node_embeds_pad.shape[1])


# ---------------------------------------------------------------------------
# Parameter init (weights [in, out], biases [1, out]) + lane-dense packing
# into two stacked slabs: weights [L, 3*Cp+Hp, Hp] (bf16), biases [L, 3, Hp] (f32)
# ---------------------------------------------------------------------------
def init_params(key, channels, num_layers):
    params = []
    C2 = 2 * channels
    for _ in range(num_layers):
        key, k1, k2, k3, k4, k5, k6 = jax.random.split(key, 7)
        w1 = jax.random.normal(k1, (C2, C2), jnp.float32) / math.sqrt(C2)
        b1 = 0.1 * jax.random.normal(k2, (1, C2), jnp.float32)
        w2 = jax.random.normal(k3, (C2, channels), jnp.float32) / math.sqrt(C2)
        b2 = 0.1 * jax.random.normal(k4, (1, channels), jnp.float32)
        w3 = jax.random.normal(k5, (channels, channels), jnp.float32) / math.sqrt(channels)
        b3 = 0.1 * jax.random.normal(k6, (1, channels), jnp.float32)
        # split W1 so the kernel can skip the explicit concat([neigh, x])
        params.append((w1[:channels], w1[channels:], b1, w2, b2, w3, b3))
    return params


def pack_params(params, C):
    L = len(params)
    Cp = _ceil_to(C, 128)
    Hp = _ceil_to(2 * C, 128)
    R = 3 * Cp + Hp
    W = np.zeros((L, R, Hp), np.float32)
    Bm = np.zeros((L, 3, Hp), np.float32)
    for l, (w1a, w1b, b1, w2, b2, w3, b3) in enumerate(params):
        W[l, 0:C, :2 * C] = np.asarray(w1a)
        W[l, Cp:Cp + C, :2 * C] = np.asarray(w1b)
        W[l, 2 * Cp:2 * Cp + 2 * C, :C] = np.asarray(w2)
        W[l, 2 * Cp + Hp:2 * Cp + Hp + C, :C] = np.asarray(w3)
        Bm[l, 0, :2 * C] = np.asarray(b1).reshape(-1)
        Bm[l, 1, :C] = np.asarray(b2).reshape(-1)
        Bm[l, 2, :C] = np.asarray(b3).reshape(-1)
    return jnp.asarray(W, jnp.bfloat16), jnp.asarray(Bm, jnp.float32)


if __name__ == "__main__":
    key = jax.random.PRNGKey(0)
    channels = 16
    num_layers = 2   # hyper['mgin_layers']

    # two small molecule-like graphs (directed adj lists: col 0 = src, col 1 = dst)
    graphs = [
        dict(n=5, adj=np.array([[0, 1], [1, 0], [1, 2], [2, 1], [2, 3],
                                [3, 2], [3, 4], [4, 3], [4, 0], [0, 4]])),
        dict(n=4, adj=np.array([[0, 1], [1, 0], [1, 2], [2, 1], [2, 3], [3, 2]])),
    ]
    max_n = max(g['n'] for g in graphs)                      # 5
    max_p = max(g['n'] * (g['n'] - 1) // 2 for g in graphs)  # 10

    k1, k2, k3 = jax.random.split(key, 3)
    node_embeds = jax.random.normal(k1, (len(graphs), max_n, channels), jnp.float32)
    edge_embeds = jax.random.normal(k2, (len(graphs), max_p, channels), jnp.float32)
    params = init_params(k3, channels, num_layers)
    packed = pack_params(params, channels)

    out = modified_gin_forward(node_embeds, edge_embeds, graphs, packed, channels)
    out = jax.block_until_ready(out)
    ref = jax.block_until_ready(reference_forward(node_embeds, edge_embeds, graphs, params))

    assert out.shape == (len(graphs), max_n, channels)
    # kernel intentionally feeds the MXU bf16 operands (f32 accumulation),
    # reference is pure f32 -> bf16-level tolerance
    if np.allclose(np.asarray(out), np.asarray(ref), rtol=5e-2, atol=5e-2):
        print("KERNEL_OK")
    else:
        print("MISMATCH max_abs_err=",
              float(np.max(np.abs(np.asarray(out) - np.asarray(ref)))))
</pallas_src>

<mosaic_0001>
module attributes {stable_mosaic.version = 11 : i64} {
  func.func @fused_mgin_kernel(%arg0: i32, %arg1: i32, %arg2: memref<128x128xf32, #tpu.memory_space<any>>, %arg3: memref<128x128xbf16, #tpu.memory_space<vmem>>, %arg4: memref<128x128xbf16, #tpu.memory_space<vmem>>, %arg5: memref<128x128xbf16, #tpu.memory_space<vmem>>, %arg6: memref<1x512x128xbf16, #tpu.memory_space<vmem>>, %arg7: memref<1x3x128xf32, #tpu.memory_space<vmem>>, %arg8: memref<128x128xf32, #tpu.memory_space<vmem>>, %arg9: memref<128x128xf32, #tpu.memory_space<vmem>>, %arg10: memref<128x128xf32, #tpu.memory_space<vmem>>, %arg11: memref<!tpu.dma_semaphore, #tpu.memory_space<semaphore_mem>>) attributes {dimension_semantics = [#tpu.dimension_semantics<arbitrary>, #tpu.dimension_semantics<arbitrary>], iteration_bounds = array<i64: 2, 1>, scalar_prefetch = 0 : i64, scratch_operands = 3 : i64, tpu.core_type = #tpu.core_type<tc>, window_params = [{}, {transform_indices = @transform_1, window_bounds = array<i64: 128, 128>}, {transform_indices = @transform_2, window_bounds = array<i64: 128, 128>}, {transform_indices = @transform_3, window_bounds = array<i64: 128, 128>}, {transform_indices = @transform_4, window_bounds = array<i64: 1, 512, 128>}, {transform_indices = @transform_5, window_bounds = array<i64: 1, 3, 128>}, {pipeline_mode = #tpu.pipeline_mode<synchronous>, transform_indices = @transform_6, window_bounds = array<i64: 128, 128>}]} {
    %c0_i32 = arith.constant 0 : i32
    %0 = arith.cmpi eq, %arg0, %c0_i32 : i32
    %c0_i32_0 = arith.constant 0 : i32
    %1 = arith.cmpi eq, %arg1, %c0_i32_0 : i32
    %2 = arith.andi %0, %1 : i1
    %3 = arith.extui %2 : i1 to i32
    %c0_i32_1 = arith.constant 0 : i32
    %4 = arith.cmpi ne, %3, %c0_i32_1 : i32
    scf.if %4 {
      tpu.enqueue_dma source(%arg2 : memref<128x128xf32, #tpu.memory_space<any>>) target(%arg9 : memref<128x128xf32, #tpu.memory_space<vmem>>) target_semaphore(%arg11 : memref<!tpu.dma_semaphore, #tpu.memory_space<semaphore_mem>>)
      tpu.wait_dma2 semaphore(%arg11 : memref<!tpu.dma_semaphore, #tpu.memory_space<semaphore_mem>>) src(%arg2 : memref<128x128xf32, #tpu.memory_space<any>>) dst(%arg9 : memref<128x128xf32, #tpu.memory_space<vmem>>)
    } else {
    }
    %c0_i32_2 = arith.constant 0 : i32
    %5 = arith.cmpi eq, %arg1, %c0_i32_2 : i32
    %6 = arith.extui %5 : i1 to i32
    %c0_i32_3 = arith.constant 0 : i32
    %7 = arith.cmpi ne, %6, %c0_i32_3 : i32
    scf.if %7 {
      %cst_19 = arith.constant 0.000000e+00 : f32
      %26 = vector.broadcast %cst_19 : f32 to vector<128x128xf32>
      %c0_20 = arith.constant 0 : index
      %c0_21 = arith.constant 0 : index
      %27 = vector.load %arg10[%c0_20, %c0_21] : memref<128x128xf32, #tpu.memory_space<vmem>>, vector<128x128xf32>
      tpu.vector_store %arg10[%c0_20, %c0_21], %26 {strides = array<i32>} : memref<128x128xf32, #tpu.memory_space<vmem>>, vector<128x128xf32>,
    } else {
    }
    %c0 = arith.constant 0 : index
    %c0_4 = arith.constant 0 : index
    %8 = vector.load %arg9[%c0, %c0_4] : memref<128x128xf32, #tpu.memory_space<vmem>>, vector<128x128xf32>
    %9 = arith.truncf %8 : vector<128x128xf32> to vector<128x128xbf16>
    %c0_5 = arith.constant 0 : index
    %c0_6 = arith.constant 0 : index
    %10 = vector.load %arg3[%c0_5, %c0_6] : memref<128x128xbf16, #tpu.memory_space<vmem>>, vector<128x128xbf16>
    %cst = arith.constant dense<0.000000e+00> : vector<128x128xf32>
    %11 = tpu.matmul %10, %9, %cst {dimension_numbers = #tpu.dot_dimension_numbers<[1], [0], [0], [1], [0, 0, 1, 1], [], []>} : vector<128x128xbf16>, vector<128x128xbf16>, vector<128x128xf32> -> vector<128x128xf32>
    %c0_7 = arith.constant 0 : index
    %c0_8 = arith.constant 0 : index
    %12 = vector.load %arg5[%c0_7, %c0_8] : memref<128x128xbf16, #tpu.memory_space<vmem>>, vector<128x128xbf16>
    %13 = arith.extf %12 : vector<128x128xbf16> to vector<128x128xf32>
    %14 = arith.addf %11, %13 : vector<128x128xf32>
    %cst_9 = arith.constant 0.000000e+00 : f32
    %15 = vector.broadcast %cst_9 : f32 to vector<128x128xf32>
    %16 = arith.maximumf %14, %15 : vector<128x128xf32>
    %c0_10 = arith.constant 0 : index
    %c0_11 = arith.constant 0 : index
    %17 = vector.load %arg10[%c0_10, %c0_11] : memref<128x128xf32, #tpu.memory_space<vmem>>, vector<128x128xf32>
    %c0_12 = arith.constant 0 : index
    %c0_13 = arith.constant 0 : index
    %18 = vector.load %arg4[%c0_12, %c0_13] : memref<128x128xbf16, #tpu.memory_space<vmem>>, vector<128x128xbf16>
    %19 = arith.truncf %16 : vector<128x128xf32> to vector<128x128xbf16>
    %cst_14 = arith.constant dense<0.000000e+00> : vector<128x128xf32>
    %20 = tpu.matmul %18, %19, %cst_14 {dimension_numbers = #tpu.dot_dimension_numbers<[1], [0], [0], [1], [0, 0, 1, 1], [], []>} : vector<128x128xbf16>, vector<128x128xbf16>, vector<128x128xf32> -> vector<128x128xf32>
    %21 = arith.addf %17, %20 : vector<128x128xf32>
    %c0_15 = arith.constant 0 : index
    %c0_16 = arith.constant 0 : index
    %22 = vector.load %arg10[%c0_15, %c0_16] : memref<128x128xf32, #tpu.memory_space<vmem>>, vector<128x128xf32>
    tpu.vector_store %arg10[%c0_15, %c0_16], %21 {strides = array<i32>} : memref<128x128xf32, #tpu.memory_space<vmem>>, vector<128x128xf32>,
    %c0_i32_17 = arith.constant 0 : i32
    %23 = arith.cmpi eq, %arg1, %c0_i32_17 : i32
    %24 = arith.extui %23 : i1 to i32
    %c0_i32_18 = arith.constant 0 : i32
    %25 = arith.cmpi ne, %24, %c0_i32_18 : i32
    scf.if %25 {
      %c0_19 = arith.constant 0 : index
      %c0_20 = arith.constant 0 : index
      %c0_21 = arith.constant 0 : index
      %26 = vector.load %arg6[%c0_19, %c0_20, %c0_21] : memref<1x512x128xbf16, #tpu.memory_space<vmem>>, vector<1x128x128xbf16>
      %27 = vector.shape_cast %26 : vector<1x128x128xbf16> to vector<128x128xbf16>
      %c0_22 = arith.constant 0 : index
      %c128 = arith.constant 128 : index
      %c0_23 = arith.constant 0 : index
      %28 = vector.load %arg6[%c0_22, %c128, %c0_23] : memref<1x512x128xbf16, #tpu.memory_space<vmem>>, vector<1x128x128xbf16>
      %29 = vector.shape_cast %28 : vector<1x128x128xbf16> to vector<128x128xbf16>
      %c0_24 = arith.constant 0 : index
      %c256 = arith.constant 256 : index
      %c0_25 = arith.constant 0 : index
      %30 = vector.load %arg6[%c0_24, %c256, %c0_25] : memref<1x512x128xbf16, #tpu.memory_space<vmem>>, vector<1x128x128xbf16>
      %31 = vector.shape_cast %30 : vector<1x128x128xbf16> to vector<128x128xbf16>
      %c0_26 = arith.constant 0 : index
      %c384 = arith.constant 384 : index
      %c0_27 = arith.constant 0 : index
      %32 = vector.load %arg6[%c0_26, %c384, %c0_27] : memref<1x512x128xbf16, #tpu.memory_space<vmem>>, vector<1x128x128xbf16>
      %33 = vector.shape_cast %32 : vector<1x128x128xbf16> to vector<128x128xbf16>
      %c0_28 = arith.constant 0 : index
      %c0_29 = arith.constant 0 : index
      %c0_30 = arith.constant 0 : index
      %34 = vector.load %arg7[%c0_28, %c0_29, %c0_30] : memref<1x3x128xf32, #tpu.memory_space<vmem>>, vector<1x1x128xf32>
      %35 = vector.shape_cast %34 : vector<1x1x128xf32> to vector<1x128xf32>
      %c0_31 = arith.constant 0 : index
      %c1 = arith.constant 1 : index
      %c0_32 = arith.constant 0 : index
      %36 = vector.load %arg7[%c0_31, %c1, %c0_32] : memref<1x3x128xf32, #tpu.memory_space<vmem>>, vector<1x1x128xf32>
      %37 = vector.shape_cast %36 : vector<1x1x128xf32> to vector<1x128xf32>
      %c0_33 = arith.constant 0 : index
      %c2 = arith.constant 2 : index
      %c0_34 = arith.constant 0 : index
      %38 = vector.load %arg7[%c0_33, %c2, %c0_34] : memref<1x3x128xf32, #tpu.memory_space<vmem>>, vector<1x1x128xf32>
      %39 = vector.shape_cast %38 : vector<1x1x128xf32> to vector<1x128xf32>
      %c0_35 = arith.constant 0 : index
      %c0_36 = arith.constant 0 : index
      %40 = vector.load %arg9[%c0_35, %c0_36] : memref<128x128xf32, #tpu.memory_space<vmem>>, vector<128x128xf32>
      %41 = arith.truncf %40 : vector<128x128xf32> to vector<128x128xbf16>
      %c0_37 = arith.constant 0 : index
      %c0_38 = arith.constant 0 : index
      %42 = vector.load %arg10[%c0_37, %c0_38] : memref<128x128xf32, #tpu.memory_space<vmem>>, vector<128x128xf32>
      %43 = arith.truncf %42 : vector<128x128xf32> to vector<128x128xbf16>
      %cst_39 = arith.constant dense<0.000000e+00> : vector<128x128xf32>
      %44 = tpu.matmul %43, %27, %cst_39 {dimension_numbers = #tpu.dot_dimension_numbers<[1], [0], [0], [1], [0, 0, 1, 1], [], []>} : vector<128x128xbf16>, vector<128x128xbf16>, vector<128x128xf32> -> vector<128x128xf32>
      %cst_40 = arith.constant dense<0.000000e+00> : vector<128x128xf32>
      %45 = tpu.matmul %41, %29, %cst_40 {dimension_numbers = #tpu.dot_dimension_numbers<[1], [0], [0], [1], [0, 0, 1, 1], [], []>} : vector<128x128xbf16>, vector<128x128xbf16>, vector<128x128xf32> -> vector<128x128xf32>
      %46 = arith.addf %44, %45 : vector<128x128xf32>
      %47 = vector.broadcast %35 : vector<1x128xf32> to vector<128x128xf32>
      %48 = arith.addf %46, %47 : vector<128x128xf32>
      %cst_41 = arith.constant 0.000000e+00 : f32
      %49 = vector.broadcast %cst_41 : f32 to vector<128x128xf32>
      %50 = arith.cmpf ogt, %48, %49 : vector<128x128xf32>
      %cst_42 = arith.constant 0.00999999977 : f32
      %51 = vector.broadcast %cst_42 : f32 to vector<128x128xf32>
      %52 = arith.mulf %51, %48 : vector<128x128xf32>
      %53 = arith.select %50, %48, %52 : vector<128x128xi1>, vector<128x128xf32>
      %54 = arith.truncf %53 : vector<128x128xf32> to vector<128x128xbf16>
      %cst_43 = arith.constant dense<0.000000e+00> : vector<128x128xf32>
      %55 = tpu.matmul %54, %31, %cst_43 {dimension_numbers = #tpu.dot_dimension_numbers<[1], [0], [0], [1], [0, 0, 1, 1], [], []>} : vector<128x128xbf16>, vector<128x128xbf16>, vector<128x128xf32> -> vector<128x128xf32>
      %56 = vector.broadcast %37 : vector<1x128xf32> to vector<128x128xf32>
      %57 = arith.addf %55, %56 : vector<128x128xf32>
      %cst_44 = arith.constant 0.000000e+00 : f32
      %58 = vector.broadcast %cst_44 : f32 to vector<128x128xf32>
      %59 = arith.cmpf ogt, %57, %58 : vector<128x128xf32>
      %cst_45 = arith.constant 0.00999999977 : f32
      %60 = vector.broadcast %cst_45 : f32 to vector<128x128xf32>
      %61 = arith.mulf %60, %57 : vector<128x128xf32>
      %62 = arith.select %59, %57, %61 : vector<128x128xi1>, vector<128x128xf32>
      %63 = arith.truncf %62 : vector<128x128xf32> to vector<128x128xbf16>
      %cst_46 = arith.constant dense<0.000000e+00> : vector<128x128xf32>
      %64 = tpu.matmul %63, %33, %cst_46 {dimension_numbers = #tpu.dot_dimension_numbers<[1], [0], [0], [1], [0, 0, 1, 1], [], []>} : vector<128x128xbf16>, vector<128x128xbf16>, vector<128x128xf32> -> vector<128x128xf32>
      %65 = vector.broadcast %39 : vector<1x128xf32> to vector<128x128xf32>
      %66 = arith.addf %64, %65 : vector<128x128xf32>
      %c0_47 = arith.constant 0 : index
      %c0_48 = arith.constant 0 : index
      %67 = vector.load %arg9[%c0_47, %c0_48] : memref<128x128xf32, #tpu.memory_space<vmem>>, vector<128x128xf32>
      tpu.vector_store %arg9[%c0_47, %c0_48], %66 {strides = array<i32>} : memref<128x128xf32, #tpu.memory_space<vmem>>, vector<128x128xf32>,
      %c0_49 = arith.constant 0 : index
      %c0_50 = arith.constant 0 : index
      %68 = vector.load %arg8[%c0_49, %c0_50] : memref<128x128xf32, #tpu.memory_space<vmem>>, vector<128x128xf32>
      tpu.vector_store %arg8[%c0_49, %c0_50], %66 {strides = array<i32>} : memref<128x128xf32, #tpu.memory_space<vmem>>, vector<128x128xf32>,
    } else {
    }
    return
  }
  func.func @transform_1(%arg0: i32, %arg1: i32) -> (i32, i32) {
    %c0_i32 = arith.constant 0 : i32
    %c0_i32_0 = arith.constant 0 : i32
    return %arg1, %c0_i32 : i32, i32
  }
  func.func @transform_2(%arg0: i32, %arg1: i32) -> (i32, i32) {
    %c0_i32 = arith.constant 0 : i32
    %c0_i32_0 = arith.constant 0 : i32
    return %c0_i32, %arg1 : i32, i32
  }
  func.func @transform_3(%arg0: i32, %arg1: i32) -> (i32, i32) {
    %c0_i32 = arith.constant 0 : i32
    %c0_i32_0 = arith.constant 0 : i32
    return %arg1, %c0_i32 : i32, i32
  }
  func.func @transform_4(%arg0: i32, %arg1: i32) -> (i32, i32, i32) {
    %c0_i32 = arith.constant 0 : i32
    %c0_i32_0 = arith.constant 0 : i32
    %c0_i32_1 = arith.constant 0 : i32
    return %arg0, %c0_i32, %c0_i32_0 : i32, i32, i32
  }
  func.func @transform_5(%arg0: i32, %arg1: i32) -> (i32, i32, i32) {
    %c0_i32 = arith.constant 0 : i32
    %c0_i32_0 = arith.constant 0 : i32
    %c0_i32_1 = arith.constant 0 : i32
    return %arg0, %c0_i32, %c0_i32_0 : i32, i32, i32
  }
  func.func @transform_6(%arg0: i32, %arg1: i32) -> (i32, i32) {
    %c0_i32 = arith.constant 0 : i32
    %c0_i32_0 = arith.constant 0 : i32
    %c0_i32_1 = arith.constant 0 : i32
    return %c0_i32, %c0_i32_0 : i32, i32
  }
}

</mosaic_0001>

<llo_original>
// kernel: tpu_custom_call.1
$region0: #{tpu_custom_call.1}
  #allocation0 [shape = 'u32[]', space=smem, size = 0x4, offset = 0x4, fixed_abs, tag = 'smem constant byte address 0x4 - core index']
  #allocation1 [shape = 'u32[144,128]{1,0:T(1,128)}', space=vmem, size = 0x12000, scoped, tag = 'internal scratch']
  #allocation2 [shape = 'f32[128,128]{1,0:T(8,128)}', space=vmem, size = 0x10000, scoped, tag = 'scratch operand']
  #allocation3 [shape = 'f32[128,128]{1,0:T(8,128)}', space=vmem, size = 0x10000, scoped, tag = 'scratch operand']
  #allocation4 [shape = 's32[1]{0}', space=sflag, size = 0x4, scoped, tag = 'scratch operand']
  #allocation9 [shape = 's32[]', space=sflag, size = 0x4, offset = 0, fixed_abs, tag = 'sflag constant byte address 0x0 - dummy sync flag']
  #allocation10 [shape = 's32[]', space=sflag, size = 0x4, offset = 0, fixed_abs, tag = 'sflag constant byte address 0x0 - dummy sync flag']
  #allocation11 [shape = 'u32[]', space=smem, size = 0x4, offset = 0x44, fixed_abs, tag = 'smem constant byte address 0x44 - assertion arg 0']
  #allocation12 [shape = 'u32[]', space=smem, size = 0x4, offset = 0x48, fixed_abs, tag = 'smem constant byte address 0x48 - assertion arg 1']
  %s0 = inlined_call_operand.hbm [shape: f32[128,128], index: 0, kind: input, shape index: {}, may-alias: {0,6}]
  %s1 = inlined_call_operand.vmem [shape: bf16[128,128], index: 1, kind: input, shape index: {}]
  %s2 = inlined_call_operand.vmem [shape: bf16[128,128], index: 2, kind: input, shape index: {}]
  %s3 = inlined_call_operand.vmem [shape: bf16[128,128], index: 3, kind: input, shape index: {}]
  %s4 = inlined_call_operand.hbm [shape: bf16[2,512,128], index: 4, kind: input, shape index: {}]
  %s5 = inlined_call_operand.vmem [shape: f32[2,3,128], index: 5, kind: input, shape index: {}]
  %s6 = inlined_call_operand.hbm [shape: f32[128,128], index: 6, kind: output, shape index: {}, may-alias: {0,6}]
  %s7 = sld [smem:[#allocation0]]
  $region73: #{tpu_custom_call.1} parent=0
    _
  %s9 = ssub.s32 1, %s7
  %s10 = scalar_select 0, %s9, %s7
  $region1: #{tpu_custom_call.1} parent=0
    #allocation5 [shape = 'u8[262144]{0}', space=vmem, size = 0x40000, scoped, tag = 'input window, operand 4']
    #allocation6 [shape = 's32[2]{0}', space=sflag, size = 0x8, scoped, tag = 'scoped memory for tpu_custom_call.1']
    #allocation7 [shape = 's32[2]{0}', space=sflag, size = 0x8, scoped, tag = 'scoped memory for tpu_custom_call.1']
    #allocation8 [shape = 'u8[65536]{0}', space=vmem, size = 0x10000, scoped, tag = 'output window, operand 0, single buffered']
    %11 = vsyncpa [#allocation6], 0
    %s12 = scalar_lea.sflag [#allocation6], 1
    %13 = vsyncpa %s12, 0
    %14 = vsyncpa [#allocation7], 0
    loop: start=0, step=1, limit=4
    $region2: #{tpu_custom_call.1} parent=1 // loop_pre_header
      _
    $region3: #{tpu_custom_call.1} parent=1 // loop_header
      %s16 = sphi 0, %s20
      %p17 = scmp.ge.s32.totalorder %s16, 4
      %s23 = sphi 0, %s35
      %s24 = sphi 0, %s31
      %s25 = sphi 0, %s23
      %s26 = sphi 0, %s24
      %s27 = sphi 0, %s25
      %s28 = sphi 0, %s26
      %s38 = sphi 0, %s40
      %s41 = sphi 0, %s38
      %s42 = sphi 0, %s41
      %s58 = sphi 0, %s42
      %s64 = sphi 0, %s66
      %s67 = sphi 0, %s64
      %s68 = sphi 0, %s67
      %s84 = sphi 0, %s68
      %s90 = sphi 0, %s92
      %s93 = sphi 0, %s90
      %s94 = sphi 0, %s93
      %s110 = sphi 0, %s94
      %s116 = sphi 0, %s118
      %s119 = sphi 0, %s116
      %s120 = sphi 0, %s119
      %s136 = sphi 0, %s120
      %s142 = sphi 0, %s144
      %s145 = sphi 0, %s142
      %s146 = sphi 0, %s145
      %s162 = sphi 0, %s146
      %s166 = sphi 0, %s166
      %s168 = sphi 0, %s166
      %s169 = sphi 0, %s168
      %s183 = sphi 0, %s169
    $region4: #{tpu_custom_call.1} parent=1 // loop_header_branch
      %19 = sbr.rel (%p17) target = $region8
    $region5: #{tpu_custom_call.1} parent=1 // loop_body
      %s21 = ssub.s32 %s16, 1
      %s22 = ssub.s32 %s16, 2
      %s29 = sadd.s32 1, %s24
      %p30 = scmp.ge.s32.totalorder %s29, 1
      %s31 = scalar_select %p30, 0, %s29
      %s32 = sadd.s32 1, %s23
      %s33 = scalar_select %p30, %s32, %s23
      %p34 = scmp.ge.s32.totalorder %s33, 2
      %s35 = scalar_select %p34, 0, %s33
      %s36 = ssub.s32 %s24, %s31
      %p37 = scmp.eq.s32.totalorder %s36, 0
      %s39 = sadd.s32 %s38, 1
      %s40 = scalar_select %p37, %s38, %s39
      %p43 = pneg %p37
      %p44 = scmp.eq.s32.totalorder %s16, 1
      %p45 = por %p43, %p44
      %p46 = scmp.ne.s32.totalorder %s38, %s41
      %p47 = scmp.eq.s32.totalorder %s16, 0
      %p48 = por %p46, %p47
      %p49 = scmp.ne.s32.totalorder %s38, %s41
      %p50 = scmp.eq.s32.totalorder %s21, 1
      %p51 = por %p49, %p50
      %p52 = scmp.ne.s32.totalorder %s41, %s42
      %p53 = scmp.eq.s32.totalorder %s21, 0
      %p54 = por %p52, %p53
      %p55 = scmp.ne.s32.totalorder %s41, %s42
      %p56 = scmp.eq.s32.totalorder %s22, 1
      %p57 = por %p55, %p56
      %p59 = scmp.ne.s32.totalorder %s42, %s58
      %p60 = scmp.eq.s32.totalorder %s22, 0
      %p61 = por %p59, %p60
      %s62 = ssub.s32 %s24, %s31
      %p63 = scmp.eq.s32.totalorder %s62, 0
      %s65 = sadd.s32 %s64, 1
      %s66 = scalar_select %p63, %s64, %s65
      %p69 = pneg %p63
      %p70 = scmp.eq.s32.totalorder %s16, 1
      %p71 = por %p69, %p70
      %p72 = scmp.ne.s32.totalorder %s64, %s67
      %p73 = scmp.eq.s32.totalorder %s16, 0
      %p74 = por %p72, %p73
      %p75 = scmp.ne.s32.totalorder %s64, %s67
      %p76 = scmp.eq.s32.totalorder %s21, 1
      %p77 = por %p75, %p76
      %p78 = scmp.ne.s32.totalorder %s67, %s68
      %p79 = scmp.eq.s32.totalorder %s21, 0
      %p80 = por %p78, %p79
      %p81 = scmp.ne.s32.totalorder %s67, %s68
      %p82 = scmp.eq.s32.totalorder %s22, 1
      %p83 = por %p81, %p82
      %p85 = scmp.ne.s32.totalorder %s68, %s84
      %p86 = scmp.eq.s32.totalorder %s22, 0
      %p87 = por %p85, %p86
      %s88 = ssub.s32 %s24, %s31
      %p89 = scmp.eq.s32.totalorder %s88, 0
      %s91 = sadd.s32 %s90, 1
      %s92 = scalar_select %p89, %s90, %s91
      %p95 = pneg %p89
      %p96 = scmp.eq.s32.totalorder %s16, 1
      %p97 = por %p95, %p96
      %p98 = scmp.ne.s32.totalorder %s90, %s93
      %p99 = scmp.eq.s32.totalorder %s16, 0
      %p100 = por %p98, %p99
      %p101 = scmp.ne.s32.totalorder %s90, %s93
      %p102 = scmp.eq.s32.totalorder %s21, 1
      %p103 = por %p101, %p102
      %p104 = scmp.ne.s32.totalorder %s93, %s94
      %p105 = scmp.eq.s32.totalorder %s21, 0
      %p106 = por %p104, %p105
      %p107 = scmp.ne.s32.totalorder %s93, %s94
      %p108 = scmp.eq.s32.totalorder %s22, 1
      %p109 = por %p107, %p108
      %p111 = scmp.ne.s32.totalorder %s94, %s110
      %p112 = scmp.eq.s32.totalorder %s22, 0
      %p113 = por %p111, %p112
      %s114 = ssub.s32 %s23, %s35
      %p115 = scmp.eq.s32.totalorder %s114, 0
      %s117 = sadd.s32 %s116, 1
      %s118 = scalar_select %p115, %s116, %s117
      %p121 = pneg %p115
      %p122 = scmp.eq.s32.totalorder %s16, 1
      %p123 = por %p121, %p122
      %p124 = scmp.ne.s32.totalorder %s116, %s119
      %p125 = scmp.eq.s32.totalorder %s16, 0
      %p126 = por %p124, %p125
      %p127 = scmp.ne.s32.totalorder %s116, %s119
      %p128 = scmp.eq.s32.totalorder %s21, 1
      %p129 = por %p127, %p128
      %p130 = scmp.ne.s32.totalorder %s119, %s120
      %p131 = scmp.eq.s32.totalorder %s21, 0
      %p132 = por %p130, %p131
      %p133 = scmp.ne.s32.totalorder %s119, %s120
      %p134 = scmp.eq.s32.totalorder %s22, 1
      %p135 = por %p133, %p134
      %p137 = scmp.ne.s32.totalorder %s120, %s136
      %p138 = scmp.eq.s32.totalorder %s22, 0
      %p139 = por %p137, %p138
      %s140 = ssub.s32 %s23, %s35
      %p141 = scmp.eq.s32.totalorder %s140, 0
      %s143 = sadd.s32 %s142, 1
      %s144 = scalar_select %p141, %s142, %s143
      %p147 = pneg %p141
      %p148 = scmp.eq.s32.totalorder %s16, 1
      %p149 = por %p147, %p148
      %p150 = scmp.ne.s32.totalorder %s142, %s145
      %p151 = scmp.eq.s32.totalorder %s16, 0
      %p152 = por %p150, %p151
      %p153 = scmp.ne.s32.totalorder %s142, %s145
      %p154 = scmp.eq.s32.totalorder %s21, 1
      %p155 = por %p153, %p154
      %p156 = scmp.ne.s32.totalorder %s145, %s146
      %p157 = scmp.eq.s32.totalorder %s21, 0
      %p158 = por %p156, %p157
      %p159 = scmp.ne.s32.totalorder %s145, %s146
      %p160 = scmp.eq.s32.totalorder %s22, 1
      %p161 = por %p159, %p160
      %p163 = scmp.ne.s32.totalorder %s146, %s162
      %p164 = scmp.eq.s32.totalorder %s22, 0
      %p165 = por %p163, %p164
      %s167 = sadd.s32 %s166, 1
      %p170 = scmp.eq.s32.totalorder %s16, 1
      %p171 = scmp.ne.s32.totalorder %s166, %s168
      %p172 = scmp.eq.s32.totalorder %s16, 0
      %p173 = por %p171, %p172
      %p174 = scmp.ne.s32.totalorder %s166, %s168
      %p175 = scmp.eq.s32.totalorder %s21, 1
      %p176 = por %p174, %p175
      %p177 = scmp.ne.s32.totalorder %s168, %s169
      %p178 = scmp.eq.s32.totalorder %s21, 0
      %p179 = por %p177, %p178
      %p180 = scmp.ne.s32.totalorder %s168, %s169
      %p181 = scmp.eq.s32.totalorder %s22, 1
      %p182 = por %p180, %p181
      %p184 = scmp.ne.s32.totalorder %s169, %s183
      %p185 = scmp.eq.s32.totalorder %s22, 0
      %p186 = por %p184, %p185
      %p187 = scmp.le.s32.totalorder 1, %s16
      %p188 = scmp.lt.s32.totalorder %s16, 3
      %p189 = pnand %p187, %p188
      %p190 = pneg %p189
      // Predicated region
      $region9: #{tpu_custom_call.1} parent=5 // pred_check
        _
      $region10: #{tpu_custom_call.1} parent=5 // pred_check_branch
        %192 = sbr.rel (%p189) target = $region12
      $region11: #{tpu_custom_call.1} parent=5 // pred_region
        %s193 = ssub.s32 %s16, 1
        // Predicated region
        $region13: #{tpu_custom_call.1} parent=11 // pred_check
          %p194 = pneg %p54
        $region14: #{tpu_custom_call.1} parent=11 // pred_check_branch
          %196 = sbr.rel (%p194) target = $region16
        $region15: #{tpu_custom_call.1} parent=11 // pred_region
          %s197 = smul.u32 16, %s26
          %p198 = scmp.lt.s32.totalorder %s197, 15
          %s199 = scalar_select %p198, %s197, 15
          %s200 = smul.addr %s199, 4
          %s201 = scalar_lea.vmem %s1, %s200
          %s202 = smul.u32 16, %s26
        $region16: #{tpu_custom_call.1} parent=11 // pred_fallthru
          _
        // Predicated region
        $region17: #{tpu_custom_call.1} parent=11 // pred_check
          %p203 = pneg %p80
        $region18: #{tpu_custom_call.1} parent=11 // pred_check_branch
          %205 = sbr.rel (%p203) target = $region20
        $region19: #{tpu_custom_call.1} parent=11 // pred_region
          %p206 = scmp.lt.s32.totalorder %s26, 0
          %s207 = scalar_select %p206, %s26, 0
          %s208 = smul.addr %s207, 4
          %s209 = scalar_lea.vmem %s2, %s208
        $region20: #{tpu_custom_call.1} parent=11 // pred_fallthru
          _
        // Predicated region
        $region21: #{tpu_custom_call.1} parent=11 // pred_check
          %p210 = pneg %p106
        $region22: #{tpu_custom_call.1} parent=11 // pred_check_branch
          %212 = sbr.rel (%p210) target = $region24
        $region23: #{tpu_custom_call.1} parent=11 // pred_region
          %s213 = smul.u32 16, %s26
          %p214 = scmp.lt.s32.totalorder %s213, 15
          %s215 = scalar_select %p214, %s213, 15
          %s216 = smul.addr %s215, 4
          %s217 = scalar_lea.vmem %s3, %s216
          %s218 = smul.u32 16, %s26
        $region24: #{tpu_custom_call.1} parent=11 // pred_fallthru
          _
      $region12: #{tpu_custom_call.1} parent=5 // pred_fallthru
        _
      %p219 = scmp.lt.s32.totalorder %s16, 2
      // Predicated region
      $region25: #{tpu_custom_call.1} parent=5 // pred_check
        %p220 = pneg %p219
      $region26: #{tpu_custom_call.1} parent=5 // pred_check_branch
        %222 = sbr.rel (%p220) target = $region28
      $region27: #{tpu_custom_call.1} parent=5 // pred_region
        // Predicated region
        $region29: #{tpu_custom_call.1} parent=27 // pred_check
          %p223 = pneg %p126
        $region30: #{tpu_custom_call.1} parent=27 // pred_check_branch
          %225 = sbr.rel (%p223) target = $region32
        $region31: #{tpu_custom_call.1} parent=27 // pred_region
          %s226 = sand.u32 %s116, 1
          %s227 = scalar_lea.sflag [#allocation6], %s226
          %s228 = sand.u32 %s116, 1
          %s229 = smul.addr %s228, 256
          %s230 = scalar_lea.vmem [#allocation5], %s229
          %s232 = ssub.s32 4096, 4096
          %233 = vsyncadd %s227, %s232
          %s234 = smul.addr %s23, 64
          %s235 = smul.addr %s234, 64
          %s236 = scalar_lea.hbm %s4, %s235
          %s237 = sshll.u32 %s230, 4
          %s238 = int_to_ptr.vmem [resolvable:$true] %s237
          %243 = dma.hbm_to_vmem [thread:$0]  %s236, 4096, %s238, %s227, 64, 64, 4
        $region32: #{tpu_custom_call.1} parent=27 // pred_fallthru
          _
        // Predicated region
        $region33: #{tpu_custom_call.1} parent=27 // pred_check
          %p244 = pneg %p152
        $region34: #{tpu_custom_call.1} parent=27 // pred_check_branch
          %246 = sbr.rel (%p244) target = $region36
        $region35: #{tpu_custom_call.1} parent=27 // pred_region
          %p247 = scmp.lt.s32.totalorder %s23, 1
          %s248 = scalar_select %p247, %s23, 1
          %s249 = smul.addr %s248, 4
          %s250 = scalar_lea.vmem %s5, %s249
        $region36: #{tpu_custom_call.1} parent=27 // pred_fallthru
          _
      $region28: #{tpu_custom_call.1} parent=5 // pred_fallthru
        _
      %p251 = scmp.le.s32.totalorder 1, %s16
      %p252 = scmp.lt.s32.totalorder %s16, 3
      %p253 = pnand %p251, %p252
      %p254 = pneg %p253
      // Predicated region
      $region37: #{tpu_custom_call.1} parent=5 // pred_check
        _
      $region38: #{tpu_custom_call.1} parent=5 // pred_check_branch
        %256 = sbr.rel (%p253) target = $region40
      $region39: #{tpu_custom_call.1} parent=5 // pred_region
        %s257 = ssub.s32 %s16, 1
        %s258 = sand.u32 %s119, 1
        %s259 = scalar_lea.sflag [#allocation6], %s258
        %s260 = sand.u32 %s119, 1
        %s261 = smul.addr %s260, 256
        %s262 = scalar_lea.vmem [#allocation5], %s261
        // Predicated region
        $region41: #{tpu_custom_call.1} parent=39 // pred_check
          %p263 = pneg %p132
        $region42: #{tpu_custom_call.1} parent=39 // pred_check_branch
          %265 = sbr.rel (%p263) target = $region44
        $region43: #{tpu_custom_call.1} parent=39 // pred_region
          %266 = dma.done %s259, 4096
        $region44: #{tpu_custom_call.1} parent=39 // pred_fallthru
          _
        %s267 = smul.u32 16, %s26
        %p268 = scmp.lt.s32.totalorder %s267, 15
        %s269 = scalar_select %p268, %s267, 15
        %s270 = smul.addr %s269, 4
        %s271 = scalar_lea.vmem %s1, %s270
        %p272 = pneg %p54
        %p273 = pneg %p51
        %p274 = scmp.lt.s32.totalorder %s26, 0
        %s275 = scalar_select %p274, %s26, 0
        %s276 = smul.addr %s275, 4
        %s277 = scalar_lea.vmem %s2, %s276
        %p278 = pneg %p80
        %p279 = pneg %p77
        %s280 = smul.u32 16, %s26
        %p281 = scmp.lt.s32.totalorder %s280, 15
        %s282 = scalar_select %p281, %s280, 15
        %s283 = smul.addr %s282, 4
        %s284 = scalar_lea.vmem %s3, %s283
        %p285 = pneg %p106
        %p286 = pneg %p103
        %s287 = sand.u32 %s119, 1
        %s288 = scalar_lea.sflag [#allocation6], %s287
        %s289 = sand.u32 %s119, 1
        %s290 = smul.addr %s289, 256
        %s291 = scalar_lea.vmem [#allocation5], %s290
        %p292 = pneg %p132
        %p293 = pneg %p129
        %p294 = scmp.lt.s32.totalorder %s25, 1
        %s295 = scalar_select %p294, %s25, 1
        %s296 = smul.addr %s295, 4
        %s297 = scalar_lea.vmem %s5, %s296
        %p298 = pneg %p158
        %p299 = pneg %p155
        %p300 = pneg %p179
        %p301 = pneg %p176
        %s302 = smul.u32 16, %s26
        %p303 = scmp.lt.s32.totalorder %s302, 15
        %s304 = scalar_select %p303, %s302, 15
        %s305 = smul.addr %s304, 4
        %s306 = scalar_lea.vmem %s1, %s305
        %s307 = smul.u32 16, %s26
        %p308 = scmp.lt.s32.totalorder %s26, 0
        %s309 = scalar_select %p308, %s26, 0
        %s310 = smul.addr %s309, 4
        %s311 = scalar_lea.vmem %s2, %s310
        %s312 = smul.u32 16, %s26
        %p313 = scmp.lt.s32.totalorder %s312, 15
        %s314 = scalar_select %p313, %s312, 15
        %s315 = smul.addr %s314, 4
        %s316 = scalar_lea.vmem %s3, %s315
        %s317 = smul.u32 16, %s26
        %p318 = scmp.lt.s32.totalorder %s25, 1
        %s319 = scalar_select %p318, %s25, 1
        %s320 = smul.addr %s319, 4
        %s321 = scalar_lea.vmem %s5, %s320
        %p323 = scmp.eq.s32.totalorder %s25, 0
        %p324 = scmp.eq.s32.totalorder %s26, 0
        %p325 = pnand %p323, %p324
        %p326 = pneg %p325
        // Predicated region
        $region45: #{tpu_custom_call.1} parent=39 // pred_check
          _
        $region46: #{tpu_custom_call.1} parent=39 // pred_check_branch
          %328 = sbr.rel (%p325) target = $region48
        $region47: #{tpu_custom_call.1} parent=39 // pred_region
          // Predicated region
          $region49: #{tpu_custom_call.1} parent=47 // pred_check
            _
          $region50: #{tpu_custom_call.1} parent=47 // pred_check_branch
            %330 = sbr.rel target = $region52
          $region51: #{tpu_custom_call.1} parent=47 // pred_region
            %331 = sst [smem:[#allocation11]] [#allocation10]
            %332 = sst [smem:[#allocation12]] [#allocation9]
          $region52: #{tpu_custom_call.1} parent=47 // pred_fallthru
            _
          %334 = shalt.err (0)
          %s336 = sshll.u32 [#allocation2], 4
          %s337 = int_to_ptr.vmem [resolvable:$true] %s336
          %339 = dma.hbm_to_vmem [thread:$0]  %s0, 2048, %s337, [#allocation4]
          %s340 = smul.u32 128, 1
          %s341 = sshll.u32 %s340, 4
          %342 = dma.done [#allocation4], %s341
        $region48: #{tpu_custom_call.1} parent=39 // pred_fallthru
          _
        // Predicated region
        $region53: #{tpu_custom_call.1} parent=39 // pred_check
          %p343 = pneg %p324
        $region54: #{tpu_custom_call.1} parent=39 // pred_check_branch
          %345 = sbr.rel (%p343) target = $region56
        $region55: #{tpu_custom_call.1} parent=39 // pred_region
          %346 = vst [vmem:[#allocation3] sm:$0xff] 0.0
          %347 = vst [vmem:[#allocation3 + $0x8] sm:$0xff] 0.0
          %348 = vst [vmem:[#allocation3 + $0x10] sm:$0xff] 0.0
          %349 = vst [vmem:[#allocation3 + $0x18] sm:$0xff] 0.0
          %350 = vst [vmem:[#allocation3 + $0x20] sm:$0xff] 0.0
          %351 = vst [vmem:[#allocation3 + $0x28] sm:$0xff] 0.0
          %352 = vst [vmem:[#allocation3 + $0x30] sm:$0xff] 0.0
          %353 = vst [vmem:[#allocation3 + $0x38] sm:$0xff] 0.0
          %354 = vst [vmem:[#allocation3 + $0x40] sm:$0xff] 0.0
          %355 = vst [vmem:[#allocation3 + $0x48] sm:$0xff] 0.0
          %356 = vst [vmem:[#allocation3 + $0x50] sm:$0xff] 0.0
          %357 = vst [vmem:[#allocation3 + $0x58] sm:$0xff] 0.0
          %358 = vst [vmem:[#allocation3 + $0x60] sm:$0xff] 0.0
          %359 = vst [vmem:[#allocation3 + $0x68] sm:$0xff] 0.0
          %360 = vst [vmem:[#allocation3 + $0x70] sm:$0xff] 0.0
          %361 = vst [vmem:[#allocation3 + $0x78] sm:$0xff] 0.0
        $region56: #{tpu_custom_call.1} parent=39 // pred_fallthru
          _
        %v362 = vld [vmem:[#allocation2] sm:$0xff]
        %v363 = vld [vmem:[#allocation2 + $0x8] sm:$0xff]
        %v364 = vld [vmem:[#allocation2 + $0x10] sm:$0xff]
        %v365 = vld [vmem:[#allocation2 + $0x18] sm:$0xff]
        %v366 = vld [vmem:[#allocation2 + $0x20] sm:$0xff]
        %v367 = vld [vmem:[#allocation2 + $0x28] sm:$0xff]
        %v368 = vld [vmem:[#allocation2 + $0x30] sm:$0xff]
        %v369 = vld [vmem:[#allocation2 + $0x38] sm:$0xff]
        %v370 = vld [vmem:[#allocation2 + $0x40] sm:$0xff]
        %v371 = vld [vmem:[#allocation2 + $0x48] sm:$0xff]
        %v372 = vld [vmem:[#allocation2 + $0x50] sm:$0xff]
        %v373 = vld [vmem:[#allocation2 + $0x58] sm:$0xff]
        %v374 = vld [vmem:[#allocation2 + $0x60] sm:$0xff]
        %v375 = vld [vmem:[#allocation2 + $0x68] sm:$0xff]
        %v376 = vld [vmem:[#allocation2 + $0x70] sm:$0xff]
        %v377 = vld [vmem:[#allocation2 + $0x78] sm:$0xff]
        %v378 = vpack.c.bf16 %v363, %v362
        %v379 = vpack.c.bf16 %v365, %v364
        %v380 = vpack.c.bf16 %v367, %v366
        %v381 = vpack.c.bf16 %v369, %v368
        %v382 = vpack.c.bf16 %v371, %v370
        %v383 = vpack.c.bf16 %v373, %v372
        %v384 = vpack.c.bf16 %v375, %v374
        %v385 = vpack.c.bf16 %v377, %v376
        %v386 = vld [vmem:[%s306] sm:$0xf]
        %v387 = vld [vmem:[%s306 + $0x4] sm:$0xf]
        %v388 = vld [vmem:[%s306 + $0x8] sm:$0xf]
        %v389 = vld [vmem:[%s306 + $0xc] sm:$0xf]
        %v390 = vld [vmem:[%s306 + $0x10] sm:$0xf]
        %v391 = vld [vmem:[%s306 + $0x14] sm:$0xf]
        %v392 = vld [vmem:[%s306 + $0x18] sm:$0xf]
        %v393 = vld [vmem:[%s306 + $0x1c] sm:$0xf]
        %v394 = vld [vmem:[%s306 + $0x20] sm:$0xf]
        %v395 = vld [vmem:[%s306 + $0x24] sm:$0xf]
        %v396 = vld [vmem:[%s306 + $0x28] sm:$0xf]
        %v397 = vld [vmem:[%s306 + $0x2c] sm:$0xf]
        %v398 = vld [vmem:[%s306 + $0x30] sm:$0xf]
        %v399 = vld [vmem:[%s306 + $0x34] sm:$0xf]
        %v400 = vld [vmem:[%s306 + $0x38] sm:$0xf]
        %v401 = vld [vmem:[%s306 + $0x3c] sm:$0xf]
        %v402 = vld [vmem:[%s316] sm:$0xf]
        %v403 = vld [vmem:[%s316 + $0x4] sm:$0xf]
        %v404 = vld [vmem:[%s316 + $0x8] sm:$0xf]
        %v405 = vld [vmem:[%s316 + $0xc] sm:$0xf]
        %v406 = vld [vmem:[%s316 + $0x10] sm:$0xf]
        %v407 = vld [vmem:[%s316 + $0x14] sm:$0xf]
        %v408 = vld [vmem:[%s316 + $0x18] sm:$0xf]
        %v409 = vld [vmem:[%s316 + $0x1c] sm:$0xf]
        %v410 = vld [vmem:[%s316 + $0x20] sm:$0xf]
        %v411 = vld [vmem:[%s316 + $0x24] sm:$0xf]
        %v412 = vld [vmem:[%s316 + $0x28] sm:$0xf]
        %v413 = vld [vmem:[%s316 + $0x2c] sm:$0xf]
        %v414 = vld [vmem:[%s316 + $0x30] sm:$0xf]
        %v415 = vld [vmem:[%s316 + $0x34] sm:$0xf]
        %v416 = vld [vmem:[%s316 + $0x38] sm:$0xf]
        %v417 = vld [vmem:[%s316 + $0x3c] sm:$0xf]
        %v418 = vunpack.c.l.bf16 %v402
        %v419 = vunpack.c.l.bf16 %v403
        %v420 = vunpack.c.l.bf16 %v404
        %v421 = vunpack.c.l.bf16 %v405
        %v422 = vunpack.c.l.bf16 %v406
        %v423 = vunpack.c.l.bf16 %v407
        %v424 = vunpack.c.l.bf16 %v408
        %v425 = vunpack.c.l.bf16 %v409
        %v426 = vunpack.c.l.bf16 %v410
        %v427 = vunpack.c.l.bf16 %v411
        %v428 = vunpack.c.l.bf16 %v412
        %v429 = vunpack.c.l.bf16 %v413
        %v430 = vunpack.c.l.bf16 %v414
        %v431 = vunpack.c.l.bf16 %v415
        %v432 = vunpack.c.l.bf16 %v416
        %v433 = vunpack.c.l.bf16 %v417
        %v450 = vunpack.c.l.b16 %v386
        %v451 = vunpack.c.l.b16 %v387
        %v452 = vunpack.c.l.b16 %v388
        %v453 = vunpack.c.l.b16 %v389
        %v454 = vunpack.c.l.b16 %v390
        %v455 = vunpack.c.l.b16 %v391
        %v456 = vunpack.c.l.b16 %v392
        %v457 = vunpack.c.l.b16 %v393
        %v458 = vunpack.c.l.b16 %v394
        %v459 = vunpack.c.l.b16 %v395
        %v460 = vunpack.c.l.b16 %v396
        %v461 = vunpack.c.l.b16 %v397
        %v462 = vunpack.c.l.b16 %v398
        %v463 = vunpack.c.l.b16 %v399
        %v464 = vunpack.c.l.b16 %v400
        %v465 = vunpack.c.l.b16 %v401
        %v466 = vpack.c.b16 %v451, %v450
        %v467 = vpack.c.b16 %v453, %v452
        %v468 = vpack.c.b16 %v455, %v454
        %v469 = vpack.c.b16 %v457, %v456
        %v470 = vpack.c.b16 %v459, %v458
        %v471 = vpack.c.b16 %v461, %v460
        %v472 = vpack.c.b16 %v463, %v462
        %v473 = vpack.c.b16 %v465, %v464
        %482 = vmatprep.subr.bf16.mxu0 0
        %483 = vmatpush1.bf16.msra.mxu0 %v385
        %484 = vmatprep.subr.bf16.mxu0 0
        %485 = vmatpush1.bf16.msra.mxu0 %v384
        %486 = vmatprep.subr.bf16.mxu0 0
        %487 = vmatpush1.bf16.msra.mxu0 %v383
        %488 = vmatprep.subr.bf16.mxu0 0
        %489 = vmatpush1.bf16.msra.mxu0 %v382
        %490 = vmatprep.subr.bf16.mxu0 0
        %491 = vmatpush1.bf16.msra.mxu0 %v381
        %492 = vmatprep.subr.bf16.mxu0 0
        %493 = vmatpush1.bf16.msra.mxu0 %v380
        %494 = vmatprep.subr.bf16.mxu0 0
        %495 = vmatpush1.bf16.msra.mxu0 %v379
        %496 = vmatprep.subr.bf16.mxu0 0
        %497 = vmatpush1.bf16.msra.mxu0 %v378
        %498 = vmatprep.subr.bf16.mxu0 0
        %499 = vmatpush2.bf16.msra.mxu0 0
        %500 = vmatprep.subr.bf16.mxu0 0
        %501 = vmatpush2.bf16.msra.mxu0 0
        %502 = vmatprep.subr.bf16.mxu0 0
        %503 = vmatpush2.bf16.msra.mxu0 0
        %504 = vmatprep.subr.bf16.mxu0 0
        %505 = vmatpush2.bf16.msra.mxu0 0
        %506 = vmatprep.subr.bf16.mxu0 0
        %507 = vmatpush2.bf16.msra.mxu0 0
        %508 = vmatprep.subr.bf16.mxu0 0
        %509 = vmatpush2.bf16.msra.mxu0 0
        %510 = vmatprep.subr.bf16.mxu0 0
        %511 = vmatpush2.bf16.msra.mxu0 0
        %512 = vmatprep.subr.bf16.mxu0 0
        %513 = vmatpush2.bf16.msra.mxu0 0
        %514 = vmatprep.mubr.bf16.mxu0 0
        %515 = vmatmul.mubr.bf16.gmra.mxu0 %v466
        %v516 = vpop.f32.mrf.mxu0
        %v517 = vadd.f32 %v418, %v516
        %v518 = vpop.f32.mrf.mxu0
        %v519 = vpop.f32.mrf.mxu0
        %v520 = vadd.f32 %v419, %v519
        %v521 = vpop.f32.mrf.mxu0
        %522 = vmatprep.mubr.bf16.mxu0 0
        %523 = vmatmul.mubr.bf16.gmra.mxu0 %v467
        %v524 = vpop.f32.mrf.mxu0
        %v525 = vadd.f32 %v420, %v524
        %v526 = vpop.f32.mrf.mxu0
        %v527 = vpop.f32.mrf.mxu0
        %v528 = vadd.f32 %v421, %v527
        %v529 = vpop.f32.mrf.mxu0
        %530 = vmatprep.mubr.bf16.mxu0 0
        %531 = vmatmul.mubr.bf16.gmra.mxu0 %v468
        %v532 = vpop.f32.mrf.mxu0
        %v533 = vadd.f32 %v422, %v532
        %v534 = vpop.f32.mrf.mxu0
        %v535 = vpop.f32.mrf.mxu0
        %v536 = vadd.f32 %v423, %v535
        %v537 = vpop.f32.mrf.mxu0
        %538 = vmatprep.mubr.bf16.mxu0 0
        %539 = vmatmul.mubr.bf16.gmra.mxu0 %v469
        %v540 = vpop.f32.mrf.mxu0
        %v541 = vadd.f32 %v424, %v540
        %v542 = vpop.f32.mrf.mxu0
        %v543 = vpop.f32.mrf.mxu0
        %v544 = vadd.f32 %v425, %v543
        %v545 = vpop.f32.mrf.mxu0
        %546 = vmatprep.mubr.bf16.mxu0 0
        %547 = vmatmul.mubr.bf16.gmra.mxu0 %v470
        %v548 = vpop.f32.mrf.mxu0
        %v549 = vadd.f32 %v426, %v548
        %v550 = vpop.f32.mrf.mxu0
        %v551 = vpop.f32.mrf.mxu0
        %v552 = vadd.f32 %v427, %v551
        %v553 = vpop.f32.mrf.mxu0
        %554 = vmatprep.mubr.bf16.mxu0 0
        %555 = vmatmul.mubr.bf16.gmra.mxu0 %v471
        %v556 = vpop.f32.mrf.mxu0
        %v557 = vadd.f32 %v428, %v556
        %v558 = vpop.f32.mrf.mxu0
        %v559 = vpop.f32.mrf.mxu0
        %v560 = vadd.f32 %v429, %v559
        %v561 = vpop.f32.mrf.mxu0
        %562 = vmatprep.mubr.bf16.mxu0 0
        %563 = vmatmul.mubr.bf16.gmra.mxu0 %v472
        %v564 = vpop.f32.mrf.mxu0
        %v565 = vadd.f32 %v430, %v564
        %v566 = vpop.f32.mrf.mxu0
        %v567 = vpop.f32.mrf.mxu0
        %v568 = vadd.f32 %v431, %v567
        %v569 = vpop.f32.mrf.mxu0
        %570 = vmatprep.mubr.bf16.mxu0 0
        %571 = vmatmul.mubr.bf16.gmra.mxu0 %v473
        %v572 = vpop.f32.mrf.mxu0
        %v573 = vadd.f32 %v432, %v572
        %v574 = vpop.f32.mrf.mxu0
        %v575 = vpop.f32.mrf.mxu0
        %v576 = vadd.f32 %v433, %v575
        %v577 = vpop.f32.mrf.mxu0
        %578 = vdwg.mxu0
        %v579 = vmax.f32 %v517, 0.0
        %v580 = vmax.f32 %v520, 0.0
        %v581 = vmax.f32 %v525, 0.0
        %v582 = vmax.f32 %v528, 0.0
        %v583 = vmax.f32 %v533, 0.0
        %v584 = vmax.f32 %v536, 0.0
        %v585 = vmax.f32 %v541, 0.0
        %v586 = vmax.f32 %v544, 0.0
        %v587 = vmax.f32 %v549, 0.0
        %v588 = vmax.f32 %v552, 0.0
        %v589 = vmax.f32 %v557, 0.0
        %v590 = vmax.f32 %v560, 0.0
        %v591 = vmax.f32 %v565, 0.0
        %v592 = vmax.f32 %v568, 0.0
        %v593 = vmax.f32 %v573, 0.0
        %v594 = vmax.f32 %v576, 0.0
        %v595 = vld [vmem:[#allocation3] sm:$0xff]
        %v596 = vld [vmem:[#allocation3 + $0x8] sm:$0xff]
        %v597 = vld [vmem:[#allocation3 + $0x10] sm:$0xff]
        %v598 = vld [vmem:[#allocation3 + $0x18] sm:$0xff]
        %v599 = vld [vmem:[#allocation3 + $0x20] sm:$0xff]
        %v600 = vld [vmem:[#allocation3 + $0x28] sm:$0xff]
        %v601 = vld [vmem:[#allocation3 + $0x30] sm:$0xff]
        %v602 = vld [vmem:[#allocation3 + $0x38] sm:$0xff]
        %v603 = vld [vmem:[#allocation3 + $0x40] sm:$0xff]
        %v604 = vld [vmem:[#allocation3 + $0x48] sm:$0xff]
        %v605 = vld [vmem:[#allocation3 + $0x50] sm:$0xff]
        %v606 = vld [vmem:[#allocation3 + $0x58] sm:$0xff]
        %v607 = vld [vmem:[#allocation3 + $0x60] sm:$0xff]
        %v608 = vld [vmem:[#allocation3 + $0x68] sm:$0xff]
        %v609 = vld [vmem:[#allocation3 + $0x70] sm:$0xff]
        %v610 = vld [vmem:[#allocation3 + $0x78] sm:$0xff]
        %v611 = vld [vmem:[%s311] sm:$0xf]
        %v612 = vld [vmem:[%s311 + $0x4] sm:$0xf]
        %v613 = vld [vmem:[%s311 + $0x8] sm:$0xf]
        %v614 = vld [vmem:[%s311 + $0xc] sm:$0xf]
        %v615 = vld [vmem:[%s311 + $0x10] sm:$0xf]
        %v616 = vld [vmem:[%s311 + $0x14] sm:$0xf]
        %v617 = vld [vmem:[%s311 + $0x18] sm:$0xf]
        %v618 = vld [vmem:[%s311 + $0x1c] sm:$0xf]
        %v619 = vld [vmem:[%s311 + $0x20] sm:$0xf]
        %v620 = vld [vmem:[%s311 + $0x24] sm:$0xf]
        %v621 = vld [vmem:[%s311 + $0x28] sm:$0xf]
        %v622 = vld [vmem:[%s311 + $0x2c] sm:$0xf]
        %v623 = vld [vmem:[%s311 + $0x30] sm:$0xf]
        %v624 = vld [vmem:[%s311 + $0x34] sm:$0xf]
        %v625 = vld [vmem:[%s311 + $0x38] sm:$0xf]
        %v626 = vld [vmem:[%s311 + $0x3c] sm:$0xf]
        %v627 = vpack.c.bf16 %v580, %v579
        %v628 = vpack.c.bf16 %v582, %v581
        %v629 = vpack.c.bf16 %v584, %v583
        %v630 = vpack.c.bf16 %v586, %v585
        %v631 = vpack.c.bf16 %v588, %v587
        %v632 = vpack.c.bf16 %v590, %v589
        %v633 = vpack.c.bf16 %v592, %v591
        %v634 = vpack.c.bf16 %v594, %v593
        %v651 = vunpack.c.l.b16 %v611
        %v652 = vunpack.c.l.b16 %v612
        %v653 = vunpack.c.l.b16 %v613
        %v654 = vunpack.c.l.b16 %v614
        %v655 = vunpack.c.l.b16 %v615
        %v656 = vunpack.c.l.b16 %v616
        %v657 = vunpack.c.l.b16 %v617
        %v658 = vunpack.c.l.b16 %v618
        %v659 = vunpack.c.l.b16 %v619
        %v660 = vunpack.c.l.b16 %v620
        %v661 = vunpack.c.l.b16 %v621
        %v662 = vunpack.c.l.b16 %v622
        %v663 = vunpack.c.l.b16 %v623
        %v664 = vunpack.c.l.b16 %v624
        %v665 = vunpack.c.l.b16 %v625
        %v666 = vunpack.c.l.b16 %v626
        %v667 = vpack.c.b16 %v652, %v651
        %v668 = vpack.c.b16 %v654, %v653
        %v669 = vpack.c.b16 %v656, %v655
        %v670 = vpack.c.b16 %v658, %v657
        %v671 = vpack.c.b16 %v660, %v659
        %v672 = vpack.c.b16 %v662, %v661
        %v673 = vpack.c.b16 %v664, %v663
        %v674 = vpack.c.b16 %v666, %v665
        %683 = vmatprep.subr.bf16.mxu0 0
        %684 = vmatpush1.bf16.msra.mxu0 %v634
        %685 = vmatprep.subr.bf16.mxu0 0
        %686 = vmatpush1.bf16.msra.mxu0 %v633
        %687 = vmatprep.subr.bf16.mxu0 0
        %688 = vmatpush1.bf16.msra.mxu0 %v632
        %689 = vmatprep.subr.bf16.mxu0 0
        %690 = vmatpush1.bf16.msra.mxu0 %v631
        %691 = vmatprep.subr.bf16.mxu0 0
        %692 = vmatpush1.bf16.msra.mxu0 %v630
        %693 = vmatprep.subr.bf16.mxu0 0
        %694 = vmatpush1.bf16.msra.mxu0 %v629
        %695 = vmatprep.subr.bf16.mxu0 0
        %696 = vmatpush1.bf16.msra.mxu0 %v628
        %697 = vmatprep.subr.bf16.mxu0 0
        %698 = vmatpush1.bf16.msra.mxu0 %v627
        %699 = vmatprep.subr.bf16.mxu0 0
        %700 = vmatpush2.bf16.msra.mxu0 0
        %701 = vmatprep.subr.bf16.mxu0 0
        %702 = vmatpush2.bf16.msra.mxu0 0
        %703 = vmatprep.subr.bf16.mxu0 0
        %704 = vmatpush2.bf16.msra.mxu0 0
        %705 = vmatprep.subr.bf16.mxu0 0
        %706 = vmatpush2.bf16.msra.mxu0 0
        %707 = vmatprep.subr.bf16.mxu0 0
        %708 = vmatpush2.bf16.msra.mxu0 0
        %709 = vmatprep.subr.bf16.mxu0 0
        %710 = vmatpush2.bf16.msra.mxu0 0
        %711 = vmatprep.subr.bf16.mxu0 0
        %712 = vmatpush2.bf16.msra.mxu0 0
        %713 = vmatprep.subr.bf16.mxu0 0
        %714 = vmatpush2.bf16.msra.mxu0 0
        %715 = vmatprep.mubr.bf16.mxu0 0
        %716 = vmatmul.mubr.bf16.gmra.mxu0 %v667
        %v717 = vpop.f32.mrf.mxu0
        %v718 = vadd.f32 0.0, %v717
        %v719 = vpop.f32.mrf.mxu0
        %v720 = vpop.f32.mrf.mxu0
        %v721 = vadd.f32 0.0, %v720
        %v722 = vpop.f32.mrf.mxu0
        %723 = vmatprep.mubr.bf16.mxu0 0
        %724 = vmatmul.mubr.bf16.gmra.mxu0 %v668
        %v725 = vpop.f32.mrf.mxu0
        %v726 = vadd.f32 0.0, %v725
        %v727 = vpop.f32.mrf.mxu0
        %v728 = vpop.f32.mrf.mxu0
        %v729 = vadd.f32 0.0, %v728
        %v730 = vpop.f32.mrf.mxu0
        %731 = vmatprep.mubr.bf16.mxu0 0
        %732 = vmatmul.mubr.bf16.gmra.mxu0 %v669
        %v733 = vpop.f32.mrf.mxu0
        %v734 = vadd.f32 0.0, %v733
        %v735 = vpop.f32.mrf.mxu0
        %v736 = vpop.f32.mrf.mxu0
        %v737 = vadd.f32 0.0, %v736
        %v738 = vpop.f32.mrf.mxu0
        %739 = vmatprep.mubr.bf16.mxu0 0
        %740 = vmatmul.mubr.bf16.gmra.mxu0 %v670
        %v741 = vpop.f32.mrf.mxu0
        %v742 = vadd.f32 0.0, %v741
        %v743 = vpop.f32.mrf.mxu0
        %v744 = vpop.f32.mrf.mxu0
        %v745 = vadd.f32 0.0, %v744
        %v746 = vpop.f32.mrf.mxu0
        %747 = vmatprep.mubr.bf16.mxu0 0
        %748 = vmatmul.mubr.bf16.gmra.mxu0 %v671
        %v749 = vpop.f32.mrf.mxu0
        %v750 = vadd.f32 0.0, %v749
        %v751 = vpop.f32.mrf.mxu0
        %v752 = vpop.f32.mrf.mxu0
        %v753 = vadd.f32 0.0, %v752
        %v754 = vpop.f32.mrf.mxu0
        %755 = vmatprep.mubr.bf16.mxu0 0
        %756 = vmatmul.mubr.bf16.gmra.mxu0 %v672
        %v757 = vpop.f32.mrf.mxu0
        %v758 = vadd.f32 0.0, %v757
        %v759 = vpop.f32.mrf.mxu0
        %v760 = vpop.f32.mrf.mxu0
        %v761 = vadd.f32 0.0, %v760
        %v762 = vpop.f32.mrf.mxu0
        %763 = vmatprep.mubr.bf16.mxu0 0
        %764 = vmatmul.mubr.bf16.gmra.mxu0 %v673
        %v765 = vpop.f32.mrf.mxu0
        %v766 = vadd.f32 0.0, %v765
        %v767 = vpop.f32.mrf.mxu0
        %v768 = vpop.f32.mrf.mxu0
        %v769 = vadd.f32 0.0, %v768
        %v770 = vpop.f32.mrf.mxu0
        %771 = vmatprep.mubr.bf16.mxu0 0
        %772 = vmatmul.mubr.bf16.gmra.mxu0 %v674
        %v773 = vpop.f32.mrf.mxu0
        %v774 = vadd.f32 0.0, %v773
        %v775 = vpop.f32.mrf.mxu0
        %v776 = vpop.f32.mrf.mxu0
        %v777 = vadd.f32 0.0, %v776
        %v778 = vpop.f32.mrf.mxu0
        %779 = vdwg.mxu0
        %v780 = vadd.f32 %v595, %v718
        %v781 = vadd.f32 %v596, %v721
        %v782 = vadd.f32 %v597, %v726
        %v783 = vadd.f32 %v598, %v729
        %v784 = vadd.f32 %v599, %v734
        %v785 = vadd.f32 %v600, %v737
        %v786 = vadd.f32 %v601, %v742
        %v787 = vadd.f32 %v602, %v745
        %v788 = vadd.f32 %v603, %v750
        %v789 = vadd.f32 %v604, %v753
        %v790 = vadd.f32 %v605, %v758
        %v791 = vadd.f32 %v606, %v761
        %v792 = vadd.f32 %v607, %v766
        %v793 = vadd.f32 %v608, %v769
        %v794 = vadd.f32 %v609, %v774
        %v795 = vadd.f32 %v610, %v777
        %796 = vst [vmem:[#allocation3] sm:$0xff] %v780
        %797 = vst [vmem:[#allocation3 + $0x8] sm:$0xff] %v781
        %798 = vst [vmem:[#allocation3 + $0x10] sm:$0xff] %v782
        %799 = vst [vmem:[#allocation3 + $0x18] sm:$0xff] %v783
        %800 = vst [vmem:[#allocation3 + $0x20] sm:$0xff] %v784
        %801 = vst [vmem:[#allocation3 + $0x28] sm:$0xff] %v785
        %802 = vst [vmem:[#allocation3 + $0x30] sm:$0xff] %v786
        %803 = vst [vmem:[#allocation3 + $0x38] sm:$0xff] %v787
        %804 = vst [vmem:[#allocation3 + $0x40] sm:$0xff] %v788
        %805 = vst [vmem:[#allocation3 + $0x48] sm:$0xff] %v789
        %806 = vst [vmem:[#allocation3 + $0x50] sm:$0xff] %v790
        %807 = vst [vmem:[#allocation3 + $0x58] sm:$0xff] %v791
        %808 = vst [vmem:[#allocation3 + $0x60] sm:$0xff] %v792
        %809 = vst [vmem:[#allocation3 + $0x68] sm:$0xff] %v793
        %810 = vst [vmem:[#allocation3 + $0x70] sm:$0xff] %v794
        %811 = vst [vmem:[#allocation3 + $0x78] sm:$0xff] %v795
        // Predicated region
        $region57: #{tpu_custom_call.1} parent=39 // pred_check
          %p812 = pneg %p324
        $region58: #{tpu_custom_call.1} parent=39 // pred_check_branch
          %814 = sbr.rel (%p812) target = $region60
        $region59: #{tpu_custom_call.1} parent=39 // pred_region
          %v815 = vld [vmem:[%s262] sm:$0xf]
          %v816 = vld [vmem:[%s262 + $0x4] sm:$0xf]
          %v817 = vld [vmem:[%s262 + $0x8] sm:$0xf]
          %v818 = vld [vmem:[%s262 + $0xc] sm:$0xf]
          %v819 = vld [vmem:[%s262 + $0x10] sm:$0xf]
          %v820 = vld [vmem:[%s262 + $0x14] sm:$0xf]
          %v821 = vld [vmem:[%s262 + $0x18] sm:$0xf]
          %v822 = vld [vmem:[%s262 + $0x1c] sm:$0xf]
          %v823 = vld [vmem:[%s262 + $0x20] sm:$0xf]
          %v824 = vld [vmem:[%s262 + $0x24] sm:$0xf]
          %v825 = vld [vmem:[%s262 + $0x28] sm:$0xf]
          %v826 = vld [vmem:[%s262 + $0x2c] sm:$0xf]
          %v827 = vld [vmem:[%s262 + $0x30] sm:$0xf]
          %v828 = vld [vmem:[%s262 + $0x34] sm:$0xf]
          %v829 = vld [vmem:[%s262 + $0x38] sm:$0xf]
          %v830 = vld [vmem:[%s262 + $0x3c] sm:$0xf]
          %v831 = vld [vmem:[%s262 + $0x40] sm:$0xf]
          %v832 = vld [vmem:[%s262 + $0x44] sm:$0xf]
          %v833 = vld [vmem:[%s262 + $0x48] sm:$0xf]
          %v834 = vld [vmem:[%s262 + $0x4c] sm:$0xf]
          %v835 = vld [vmem:[%s262 + $0x50] sm:$0xf]
          %v836 = vld [vmem:[%s262 + $0x54] sm:$0xf]
          %v837 = vld [vmem:[%s262 + $0x58] sm:$0xf]
          %v838 = vld [vmem:[%s262 + $0x5c] sm:$0xf]
          %v839 = vld [vmem:[%s262 + $0x60] sm:$0xf]
          %v840 = vld [vmem:[%s262 + $0x64] sm:$0xf]
          %v841 = vld [vmem:[%s262 + $0x68] sm:$0xf]
          %v842 = vld [vmem:[%s262 + $0x6c] sm:$0xf]
          %v843 = vld [vmem:[%s262 + $0x70] sm:$0xf]
          %v844 = vld [vmem:[%s262 + $0x74] sm:$0xf]
          %v845 = vld [vmem:[%s262 + $0x78] sm:$0xf]
          %v846 = vld [vmem:[%s262 + $0x7c] sm:$0xf]
          %v847 = vld [vmem:[%s262 + $0x80] sm:$0xf]
          %v848 = vld [vmem:[%s262 + $0x84] sm:$0xf]
          %v849 = vld [vmem:[%s262 + $0x88] sm:$0xf]
          %v850 = vld [vmem:[%s262 + $0x8c] sm:$0xf]
          %v851 = vld [vmem:[%s262 + $0x90] sm:$0xf]
          %v852 = vld [vmem:[%s262 + $0x94] sm:$0xf]
          %v853 = vld [vmem:[%s262 + $0x98] sm:$0xf]
          %v854 = vld [vmem:[%s262 + $0x9c] sm:$0xf]
          %v855 = vld [vmem:[%s262 + $0xa0] sm:$0xf]
          %v856 = vld [vmem:[%s262 + $0xa4] sm:$0xf]
          %v857 = vld [vmem:[%s262 + $0xa8] sm:$0xf]
          %v858 = vld [vmem:[%s262 + $0xac] sm:$0xf]
          %v859 = vld [vmem:[%s262 + $0xb0] sm:$0xf]
          %v860 = vld [vmem:[%s262 + $0xb4] sm:$0xf]
          %v861 = vld [vmem:[%s262 + $0xb8] sm:$0xf]
          %v862 = vld [vmem:[%s262 + $0xbc] sm:$0xf]
          %v863 = vld [vmem:[%s262 + $0xc0] sm:$0xf]
          %v864 = vld [vmem:[%s262 + $0xc4] sm:$0xf]
          %v865 = vld [vmem:[%s262 + $0xc8] sm:$0xf]
          %v866 = vld [vmem:[%s262 + $0xcc] sm:$0xf]
          %v867 = vld [vmem:[%s262 + $0xd0] sm:$0xf]
          %v868 = vld [vmem:[%s262 + $0xd4] sm:$0xf]
          %v869 = vld [vmem:[%s262 + $0xd8] sm:$0xf]
          %v870 = vld [vmem:[%s262 + $0xdc] sm:$0xf]
          %v871 = vld [vmem:[%s262 + $0xe0] sm:$0xf]
          %v872 = vld [vmem:[%s262 + $0xe4] sm:$0xf]
          %v873 = vld [vmem:[%s262 + $0xe8] sm:$0xf]
          %v874 = vld [vmem:[%s262 + $0xec] sm:$0xf]
          %v875 = vld [vmem:[%s262 + $0xf0] sm:$0xf]
          %v876 = vld [vmem:[%s262 + $0xf4] sm:$0xf]
          %v877 = vld [vmem:[%s262 + $0xf8] sm:$0xf]
          %v878 = vld [vmem:[%s262 + $0xfc] sm:$0xf]
          %v879 = vld [vmem:[%s321] sm:$0x1]
          %v880 = vld [vmem:[%s321 + $0x1] sm:$0x1]
          %v881 = vld [vmem:[%s321 + $0x2] sm:$0x1]
          %v882 = vld [vmem:[#allocation2] sm:$0xff]
          %v883 = vld [vmem:[#allocation2 + $0x8] sm:$0xff]
          %v884 = vld [vmem:[#allocation2 + $0x10] sm:$0xff]
          %v885 = vld [vmem:[#allocation2 + $0x18] sm:$0xff]
          %v886 = vld [vmem:[#allocation2 + $0x20] sm:$0xff]
          %v887 = vld [vmem:[#allocation2 + $0x28] sm:$0xff]
          %v888 = vld [vmem:[#allocation2 + $0x30] sm:$0xff]
          %v889 = vld [vmem:[#allocation2 + $0x38] sm:$0xff]
          %v890 = vld [vmem:[#allocation2 + $0x40] sm:$0xff]
          %v891 = vld [vmem:[#allocation2 + $0x48] sm:$0xff]
          %v892 = vld [vmem:[#allocation2 + $0x50] sm:$0xff]
          %v893 = vld [vmem:[#allocation2 + $0x58] sm:$0xff]
          %v894 = vld [vmem:[#allocation2 + $0x60] sm:$0xff]
          %v895 = vld [vmem:[#allocation2 + $0x68] sm:$0xff]
          %v896 = vld [vmem:[#allocation2 + $0x70] sm:$0xff]
          %v897 = vld [vmem:[#allocation2 + $0x78] sm:$0xff]
          %v898 = vpack.c.bf16 %v883, %v882
          %v899 = vpack.c.bf16 %v885, %v884
          %v900 = vpack.c.bf16 %v887, %v886
          %v901 = vpack.c.bf16 %v889, %v888
          %v902 = vpack.c.bf16 %v891, %v890
          %v903 = vpack.c.bf16 %v893, %v892
          %v904 = vpack.c.bf16 %v895, %v894
          %v905 = vpack.c.bf16 %v897, %v896
          %v906 = vld [vmem:[#allocation3] sm:$0xff]
          %v907 = vld [vmem:[#allocation3 + $0x8] sm:$0xff]
          %v908 = vld [vmem:[#allocation3 + $0x10] sm:$0xff]
          %v909 = vld [vmem:[#allocation3 + $0x18] sm:$0xff]
          %v910 = vld [vmem:[#allocation3 + $0x20] sm:$0xff]
          %v911 = vld [vmem:[#allocation3 + $0x28] sm:$0xff]
          %v912 = vld [vmem:[#allocation3 + $0x30] sm:$0xff]
          %v913 = vld [vmem:[#allocation3 + $0x38] sm:$0xff]
          %v914 = vld [vmem:[#allocation3 + $0x40] sm:$0xff]
          %v915 = vld [vmem:[#allocation3 + $0x48] sm:$0xff]
          %v916 = vld [vmem:[#allocation3 + $0x50] sm:$0xff]
          %v917 = vld [vmem:[#allocation3 + $0x58] sm:$0xff]
          %v918 = vld [vmem:[#allocation3 + $0x60] sm:$0xff]
          %v919 = vld [vmem:[#allocation3 + $0x68] sm:$0xff]
          %v920 = vld [vmem:[#allocation3 + $0x70] sm:$0xff]
          %v921 = vld [vmem:[#allocation3 + $0x78] sm:$0xff]
          %v922 = vpack.c.bf16 %v907, %v906
          %v923 = vpack.c.bf16 %v909, %v908
          %v924 = vpack.c.bf16 %v911, %v910
          %v925 = vpack.c.bf16 %v913, %v912
          %v926 = vpack.c.bf16 %v915, %v914
          %v927 = vpack.c.bf16 %v917, %v916
          %v928 = vpack.c.bf16 %v919, %v918
          %v929 = vpack.c.bf16 %v921, %v920
          %v946 = vunpack.c.l.b16 %v831
          %v947 = vunpack.c.l.b16 %v832
          %v948 = vunpack.c.l.b16 %v833
          %v949 = vunpack.c.l.b16 %v834
          %v950 = vunpack.c.l.b16 %v835
          %v951 = vunpack.c.l.b16 %v836
          %v952 = vunpack.c.l.b16 %v837
          %v953 = vunpack.c.l.b16 %v838
          %v954 = vunpack.c.l.b16 %v839
          %v955 = vunpack.c.l.b16 %v840
          %v956 = vunpack.c.l.b16 %v841
          %v957 = vunpack.c.l.b16 %v842
          %v958 = vunpack.c.l.b16 %v843
          %v959 = vunpack.c.l.b16 %v844
          %v960 = vunpack.c.l.b16 %v845
          %v961 = vunpack.c.l.b16 %v846
          %v962 = vpack.c.b16 %v947, %v946
          %v963 = vpack.c.b16 %v949, %v948
          %v964 = vpack.c.b16 %v951, %v950
          %v965 = vpack.c.b16 %v953, %v952
          %v966 = vpack.c.b16 %v955, %v954
          %v967 = vpack.c.b16 %v957, %v956
          %v968 = vpack.c.b16 %v959, %v958
          %v969 = vpack.c.b16 %v961, %v960
          %978 = vmatprep.subr.bf16.mxu0 0
          %979 = vmatpush1.bf16.msra.mxu0 %v969
          %980 = vmatprep.subr.bf16.mxu0 0
          %981 = vmatpush1.bf16.msra.mxu0 %v968
          %982 = vmatprep.subr.bf16.mxu0 0
          %983 = vmatpush1.bf16.msra.mxu0 %v967
          %984 = vmatprep.subr.bf16.mxu0 0
          %985 = vmatpush1.bf16.msra.mxu0 %v966
          %986 = vmatprep.subr.bf16.mxu0 0
          %987 = vmatpush1.bf16.msra.mxu0 %v965
          %988 = vmatprep.subr.bf16.mxu0 0
          %989 = vmatpush1.bf16.msra.mxu0 %v964
          %990 = vmatprep.subr.bf16.mxu0 0
          %991 = vmatpush1.bf16.msra.mxu0 %v963
          %992 = vmatprep.subr.bf16.mxu0 0
          %993 = vmatpush1.bf16.msra.mxu0 %v962
          %994 = vmatprep.subr.bf16.mxu0 0
          %995 = vmatpush2.bf16.msra.mxu0 0
          %996 = vmatprep.subr.bf16.mxu0 0
          %997 = vmatpush2.bf16.msra.mxu0 0
          %998 = vmatprep.subr.bf16.mxu0 0
          %999 = vmatpush2.bf16.msra.mxu0 0
          %1000 = vmatprep.subr.bf16.mxu0 0
          %1001 = vmatpush2.bf16.msra.mxu0 0
          %1002 = vmatprep.subr.bf16.mxu0 0
          %1003 = vmatpush2.bf16.msra.mxu0 0
          %1004 = vmatprep.subr.bf16.mxu0 0
          %1005 = vmatpush2.bf16.msra.mxu0 0
          %1006 = vmatprep.subr.bf16.mxu0 0
          %1007 = vmatpush2.bf16.msra.mxu0 0
          %1008 = vmatprep.subr.bf16.mxu0 0
          %1009 = vmatpush2.bf16.msra.mxu0 0
          %1010 = vmatprep.mubr.bf16.mxu0 0
          %1011 = vmatmul.mubr.bf16.gmra.mxu0 %v898
          %v1012 = vpop.f32.mrf.mxu0
          %v1013 = vadd.f32 0.0, %v1012
          %v1014 = vpop.f32.mrf.mxu0
          %v1015 = vpop.f32.mrf.mxu0
          %v1016 = vadd.f32 0.0, %v1015
          %v1017 = vpop.f32.mrf.mxu0
          %1018 = vmatprep.mubr.bf16.mxu0 0
          %1019 = vmatmul.mubr.bf16.gmra.mxu0 %v899
          %v1020 = vpop.f32.mrf.mxu0
          %v1021 = vadd.f32 0.0, %v1020
          %v1022 = vpop.f32.mrf.mxu0
          %v1023 = vpop.f32.mrf.mxu0
          %v1024 = vadd.f32 0.0, %v1023
          %v1025 = vpop.f32.mrf.mxu0
          %1026 = vmatprep.mubr.bf16.mxu0 0
          %1027 = vmatmul.mubr.bf16.gmra.mxu0 %v900
          %v1028 = vpop.f32.mrf.mxu0
          %v1029 = vadd.f32 0.0, %v1028
          %v1030 = vpop.f32.mrf.mxu0
          %v1031 = vpop.f32.mrf.mxu0
          %v1032 = vadd.f32 0.0, %v1031
          %v1033 = vpop.f32.mrf.mxu0
          %1034 = vmatprep.mubr.bf16.mxu0 0
          %1035 = vmatmul.mubr.bf16.gmra.mxu0 %v901
          %v1036 = vpop.f32.mrf.mxu0
          %v1037 = vadd.f32 0.0, %v1036
          %v1038 = vpop.f32.mrf.mxu0
          %v1039 = vpop.f32.mrf.mxu0
          %v1040 = vadd.f32 0.0, %v1039
          %v1041 = vpop.f32.mrf.mxu0
          %1042 = vmatprep.mubr.bf16.mxu0 0
          %1043 = vmatmul.mubr.bf16.gmra.mxu0 %v902
          %v1044 = vpop.f32.mrf.mxu0
          %v1045 = vadd.f32 0.0, %v1044
          %v1046 = vpop.f32.mrf.mxu0
          %v1047 = vpop.f32.mrf.mxu0
          %v1048 = vadd.f32 0.0, %v1047
          %v1049 = vpop.f32.mrf.mxu0
          %1050 = vmatprep.mubr.bf16.mxu0 0
          %1051 = vmatmul.mubr.bf16.gmra.mxu0 %v903
          %v1052 = vpop.f32.mrf.mxu0
          %v1053 = vadd.f32 0.0, %v1052
          %v1054 = vpop.f32.mrf.mxu0
          %v1055 = vpop.f32.mrf.mxu0
          %v1056 = vadd.f32 0.0, %v1055
          %v1057 = vpop.f32.mrf.mxu0
          %1058 = vmatprep.mubr.bf16.mxu0 0
          %1059 = vmatmul.mubr.bf16.gmra.mxu0 %v904
          %v1060 = vpop.f32.mrf.mxu0
          %v1061 = vadd.f32 0.0, %v1060
          %v1062 = vpop.f32.mrf.mxu0
          %v1063 = vpop.f32.mrf.mxu0
          %v1064 = vadd.f32 0.0, %v1063
          %v1065 = vpop.f32.mrf.mxu0
          %1066 = vmatprep.mubr.bf16.mxu0 0
          %1067 = vmatmul.mubr.bf16.gmra.mxu0 %v905
          %v1068 = vpop.f32.mrf.mxu0
          %v1069 = vadd.f32 0.0, %v1068
          %v1070 = vpop.f32.mrf.mxu0
          %v1071 = vpop.f32.mrf.mxu0
          %v1072 = vadd.f32 0.0, %v1071
          %v1073 = vpop.f32.mrf.mxu0
          %1074 = vdwg.mxu0
          %v1091 = vunpack.c.l.b16 %v815
          %v1092 = vunpack.c.l.b16 %v816
          %v1093 = vunpack.c.l.b16 %v817
          %v1094 = vunpack.c.l.b16 %v818
          %v1095 = vunpack.c.l.b16 %v819
          %v1096 = vunpack.c.l.b16 %v820
          %v1097 = vunpack.c.l.b16 %v821
          %v1098 = vunpack.c.l.b16 %v822
          %v1099 = vunpack.c.l.b16 %v823
          %v1100 = vunpack.c.l.b16 %v824
          %v1101 = vunpack.c.l.b16 %v825
          %v1102 = vunpack.c.l.b16 %v826
          %v1103 = vunpack.c.l.b16 %v827
          %v1104 = vunpack.c.l.b16 %v828
          %v1105 = vunpack.c.l.b16 %v829
          %v1106 = vunpack.c.l.b16 %v830
          %v1107 = vpack.c.b16 %v1092, %v1091
          %v1108 = vpack.c.b16 %v1094, %v1093
          %v1109 = vpack.c.b16 %v1096, %v1095
          %v1110 = vpack.c.b16 %v1098, %v1097
          %v1111 = vpack.c.b16 %v1100, %v1099
          %v1112 = vpack.c.b16 %v1102, %v1101
          %v1113 = vpack.c.b16 %v1104, %v1103
          %v1114 = vpack.c.b16 %v1106, %v1105
          %1123 = vmatprep.subr.bf16.mxu0 0
          %1124 = vmatpush1.bf16.msra.mxu0 %v1114
          %1125 = vmatprep.subr.bf16.mxu0 0
          %1126 = vmatpush1.bf16.msra.mxu0 %v1113
          %1127 = vmatprep.subr.bf16.mxu0 0
          %1128 = vmatpush1.bf16.msra.mxu0 %v1112
          %1129 = vmatprep.subr.bf16.mxu0 0
          %1130 = vmatpush1.bf16.msra.mxu0 %v1111
          %1131 = vmatprep.subr.bf16.mxu0 0
          %1132 = vmatpush1.bf16.msra.mxu0 %v1110
          %1133 = vmatprep.subr.bf16.mxu0 0
          %1134 = vmatpush1.bf16.msra.mxu0 %v1109
          %1135 = vmatprep.subr.bf16.mxu0 0
          %1136 = vmatpush1.bf16.msra.mxu0 %v1108
          %1137 = vmatprep.subr.bf16.mxu0 0
          %1138 = vmatpush1.bf16.msra.mxu0 %v1107
          %1139 = vmatprep.subr.bf16.mxu0 0
          %1140 = vmatpush2.bf16.msra.mxu0 0
          %1141 = vmatprep.subr.bf16.mxu0 0
          %1142 = vmatpush2.bf16.msra.mxu0 0
          %1143 = vmatprep.subr.bf16.mxu0 0
          %1144 = vmatpush2.bf16.msra.mxu0 0
          %1145 = vmatprep.subr.bf16.mxu0 0
          %1146 = vmatpush2.bf16.msra.mxu0 0
          %1147 = vmatprep.subr.bf16.mxu0 0
          %1148 = vmatpush2.bf16.msra.mxu0 0
          %1149 = vmatprep.subr.bf16.mxu0 0
          %1150 = vmatpush2.bf16.msra.mxu0 0
          %1151 = vmatprep.subr.bf16.mxu0 0
          %1152 = vmatpush2.bf16.msra.mxu0 0
          %1153 = vmatprep.subr.bf16.mxu0 0
          %1154 = vmatpush2.bf16.msra.mxu0 0
          %1155 = vmatprep.mubr.bf16.mxu0 0
          %1156 = vmatmul.mubr.bf16.gmra.mxu0 %v922
          %v1157 = vpop.f32.mrf.mxu0
          %v1158 = vadd.f32 %v1013, %v1157
          %v1159 = vpop.f32.mrf.mxu0
          %v1160 = vpop.f32.mrf.mxu0
          %v1161 = vadd.f32 %v1016, %v1160
          %v1162 = vpop.f32.mrf.mxu0
          %1163 = vmatprep.mubr.bf16.mxu0 0
          %1164 = vmatmul.mubr.bf16.gmra.mxu0 %v923
          %v1165 = vpop.f32.mrf.mxu0
          %v1166 = vadd.f32 %v1021, %v1165
          %v1167 = vpop.f32.mrf.mxu0
          %v1168 = vpop.f32.mrf.mxu0
          %v1169 = vadd.f32 %v1024, %v1168
          %v1170 = vpop.f32.mrf.mxu0
          %1171 = vmatprep.mubr.bf16.mxu0 0
          %1172 = vmatmul.mubr.bf16.gmra.mxu0 %v924
          %v1173 = vpop.f32.mrf.mxu0
          %v1174 = vadd.f32 %v1029, %v1173
          %v1175 = vpop.f32.mrf.mxu0
          %v1176 = vpop.f32.mrf.mxu0
          %v1177 = vadd.f32 %v1032, %v1176
          %v1178 = vpop.f32.mrf.mxu0
          %1179 = vmatprep.mubr.bf16.mxu0 0
          %1180 = vmatmul.mubr.bf16.gmra.mxu0 %v925
          %v1181 = vpop.f32.mrf.mxu0
          %v1182 = vadd.f32 %v1037, %v1181
          %v1183 = vpop.f32.mrf.mxu0
          %v1184 = vpop.f32.mrf.mxu0
          %v1185 = vadd.f32 %v1040, %v1184
          %v1186 = vpop.f32.mrf.mxu0
          %1187 = vmatprep.mubr.bf16.mxu0 0
          %1188 = vmatmul.mubr.bf16.gmra.mxu0 %v926
          %v1189 = vpop.f32.mrf.mxu0
          %v1190 = vadd.f32 %v1045, %v1189
          %v1191 = vpop.f32.mrf.mxu0
          %v1192 = vpop.f32.mrf.mxu0
          %v1193 = vadd.f32 %v1048, %v1192
          %v1194 = vpop.f32.mrf.mxu0
          %1195 = vmatprep.mubr.bf16.mxu0 0
          %1196 = vmatmul.mubr.bf16.gmra.mxu0 %v927
          %v1197 = vpop.f32.mrf.mxu0
          %v1198 = vadd.f32 %v1053, %v1197
          %v1199 = vpop.f32.mrf.mxu0
          %v1200 = vpop.f32.mrf.mxu0
          %v1201 = vadd.f32 %v1056, %v1200
          %v1202 = vpop.f32.mrf.mxu0
          %1203 = vmatprep.mubr.bf16.mxu0 0
          %1204 = vmatmul.mubr.bf16.gmra.mxu0 %v928
          %v1205 = vpop.f32.mrf.mxu0
          %v1206 = vadd.f32 %v1061, %v1205
          %v1207 = vpop.f32.mrf.mxu0
          %v1208 = vpop.f32.mrf.mxu0
          %v1209 = vadd.f32 %v1064, %v1208
          %v1210 = vpop.f32.mrf.mxu0
          %1211 = vmatprep.mubr.bf16.mxu0 0
          %1212 = vmatmul.mubr.bf16.gmra.mxu0 %v929
          %v1213 = vpop.f32.mrf.mxu0
          %v1214 = vadd.f32 %v1069, %v1213
          %v1215 = vpop.f32.mrf.mxu0
          %v1216 = vpop.f32.mrf.mxu0
          %v1217 = vadd.f32 %v1072, %v1216
          %v1218 = vpop.f32.mrf.mxu0
          %1219 = vdwg.mxu0
          %v1220 = vlaneseq
          %v1221 = vshrl.u32 %v1220, 7
          %v1222 = vsub.s32 0, %v1221
          %v1223 = vrot.slane %v879, %v1222
          %v1224 = vadd.f32 %v1158, %v1223
          %v1225 = vadd.f32 %v1161, %v1223
          %v1226 = vadd.f32 %v1166, %v1223
          %v1227 = vadd.f32 %v1169, %v1223
          %v1228 = vadd.f32 %v1174, %v1223
          %v1229 = vadd.f32 %v1177, %v1223
          %v1230 = vadd.f32 %v1182, %v1223
          %v1231 = vadd.f32 %v1185, %v1223
          %v1232 = vadd.f32 %v1190, %v1223
          %v1233 = vadd.f32 %v1193, %v1223
          %v1234 = vadd.f32 %v1198, %v1223
          %v1235 = vadd.f32 %v1201, %v1223
          %v1236 = vadd.f32 %v1206, %v1223
          %v1237 = vadd.f32 %v1209, %v1223
          %v1238 = vadd.f32 %v1214, %v1223
          %v1239 = vadd.f32 %v1217, %v1223
          %vm1240 = vcmp.gt.f32.partialorder %v1224, 0.0
          %vm1241 = vcmp.gt.f32.partialorder %v1225, 0.0
          %vm1242 = vcmp.gt.f32.partialorder %v1226, 0.0
          %vm1243 = vcmp.gt.f32.partialorder %v1227, 0.0
          %vm1244 = vcmp.gt.f32.partialorder %v1228, 0.0
          %vm1245 = vcmp.gt.f32.partialorder %v1229, 0.0
          %vm1246 = vcmp.gt.f32.partialorder %v1230, 0.0
          %vm1247 = vcmp.gt.f32.partialorder %v1231, 0.0
          %vm1248 = vcmp.gt.f32.partialorder %v1232, 0.0
          %vm1249 = vcmp.gt.f32.partialorder %v1233, 0.0
          %vm1250 = vcmp.gt.f32.partialorder %v1234, 0.0
          %vm1251 = vcmp.gt.f32.partialorder %v1235, 0.0
          %vm1252 = vcmp.gt.f32.partialorder %v1236, 0.0
          %vm1253 = vcmp.gt.f32.partialorder %v1237, 0.0
          %vm1254 = vcmp.gt.f32.partialorder %v1238, 0.0
          %vm1255 = vcmp.gt.f32.partialorder %v1239, 0.0
          %v1256 = vmul.f32 %v1224, 0.01
          %v1257 = vmul.f32 %v1225, 0.01
          %v1258 = vmul.f32 %v1226, 0.01
          %v1259 = vmul.f32 %v1227, 0.01
          %v1260 = vmul.f32 %v1228, 0.01
          %v1261 = vmul.f32 %v1229, 0.01
          %v1262 = vmul.f32 %v1230, 0.01
          %v1263 = vmul.f32 %v1231, 0.01
          %v1264 = vmul.f32 %v1232, 0.01
          %v1265 = vmul.f32 %v1233, 0.01
          %v1266 = vmul.f32 %v1234, 0.01
          %v1267 = vmul.f32 %v1235, 0.01
          %v1268 = vmul.f32 %v1236, 0.01
          %v1269 = vmul.f32 %v1237, 0.01
          %v1270 = vmul.f32 %v1238, 0.01
          %v1271 = vmul.f32 %v1239, 0.01
          %v1272 = vsel %vm1240, %v1224, %v1256
          %v1273 = vsel %vm1241, %v1225, %v1257
          %v1274 = vsel %vm1242, %v1226, %v1258
          %v1275 = vsel %vm1243, %v1227, %v1259
          %v1276 = vsel %vm1244, %v1228, %v1260
          %v1277 = vsel %vm1245, %v1229, %v1261
          %v1278 = vsel %vm1246, %v1230, %v1262
          %v1279 = vsel %vm1247, %v1231, %v1263
          %v1280 = vsel %vm1248, %v1232, %v1264
          %v1281 = vsel %vm1249, %v1233, %v1265
          %v1282 = vsel %vm1250, %v1234, %v1266
          %v1283 = vsel %vm1251, %v1235, %v1267
          %v1284 = vsel %vm1252, %v1236, %v1268
          %v1285 = vsel %vm1253, %v1237, %v1269
          %v1286 = vsel %vm1254, %v1238, %v1270
          %v1287 = vsel %vm1255, %v1239, %v1271
          %v1288 = vpack.c.bf16 %v1273, %v1272
          %v1289 = vpack.c.bf16 %v1275, %v1274
          %v1290 = vpack.c.bf16 %v1277, %v1276
          %v1291 = vpack.c.bf16 %v1279, %v1278
          %v1292 = vpack.c.bf16 %v1281, %v1280
          %v1293 = vpack.c.bf16 %v1283, %v1282
          %v1294 = vpack.c.bf16 %v1285, %v1284
          %v1295 = vpack.c.bf16 %v1287, %v1286
          %v1296 = vlaneseq
          %v1297 = vshrl.u32 %v1296, 7
          %v1298 = vsub.s32 0, %v1297
          %v1299 = vrot.slane %v880, %v1298
          %v1316 = vunpack.c.l.b16 %v847
          %v1317 = vunpack.c.l.b16 %v848
          %v1318 = vunpack.c.l.b16 %v849
          %v1319 = vunpack.c.l.b16 %v850
          %v1320 = vunpack.c.l.b16 %v851
          %v1321 = vunpack.c.l.b16 %v852
          %v1322 = vunpack.c.l.b16 %v853
          %v1323 = vunpack.c.l.b16 %v854
          %v1324 = vunpack.c.l.b16 %v855
          %v1325 = vunpack.c.l.b16 %v856
          %v1326 = vunpack.c.l.b16 %v857
          %v1327 = vunpack.c.l.b16 %v858
          %v1328 = vunpack.c.l.b16 %v859
          %v1329 = vunpack.c.l.b16 %v860
          %v1330 = vunpack.c.l.b16 %v861
          %v1331 = vunpack.c.l.b16 %v862
          %v1332 = vpack.c.b16 %v1317, %v1316
          %v1333 = vpack.c.b16 %v1319, %v1318
          %v1334 = vpack.c.b16 %v1321, %v1320
          %v1335 = vpack.c.b16 %v1323, %v1322
          %v1336 = vpack.c.b16 %v1325, %v1324
          %v1337 = vpack.c.b16 %v1327, %v1326
          %v1338 = vpack.c.b16 %v1329, %v1328
          %v1339 = vpack.c.b16 %v1331, %v1330
          %1348 = vmatprep.subr.bf16.mxu0 0
          %1349 = vmatpush1.bf16.msra.mxu0 %v1339
          %1350 = vmatprep.subr.bf16.mxu0 0
          %1351 = vmatpush1.bf16.msra.mxu0 %v1338
          %1352 = vmatprep.subr.bf16.mxu0 0
          %1353 = vmatpush1.bf16.msra.mxu0 %v1337
          %1354 = vmatprep.subr.bf16.mxu0 0
          %1355 = vmatpush1.bf16.msra.mxu0 %v1336
          %1356 = vmatprep.subr.bf16.mxu0 0
          %1357 = vmatpush1.bf16.msra.mxu0 %v1335
          %1358 = vmatprep.subr.bf16.mxu0 0
          %1359 = vmatpush1.bf16.msra.mxu0 %v1334
          %1360 = vmatprep.subr.bf16.mxu0 0
          %1361 = vmatpush1.bf16.msra.mxu0 %v1333
          %1362 = vmatprep.subr.bf16.mxu0 0
          %1363 = vmatpush1.bf16.msra.mxu0 %v1332
          %1364 = vmatprep.subr.bf16.mxu0 0
          %1365 = vmatpush2.bf16.msra.mxu0 0
          %1366 = vmatprep.subr.bf16.mxu0 0
          %1367 = vmatpush2.bf16.msra.mxu0 0
          %1368 = vmatprep.subr.bf16.mxu0 0
          %1369 = vmatpush2.bf16.msra.mxu0 0
          %1370 = vmatprep.subr.bf16.mxu0 0
          %1371 = vmatpush2.bf16.msra.mxu0 0
          %1372 = vmatprep.subr.bf16.mxu0 0
          %1373 = vmatpush2.bf16.msra.mxu0 0
          %1374 = vmatprep.subr.bf16.mxu0 0
          %1375 = vmatpush2.bf16.msra.mxu0 0
          %1376 = vmatprep.subr.bf16.mxu0 0
          %1377 = vmatpush2.bf16.msra.mxu0 0
          %1378 = vmatprep.subr.bf16.mxu0 0
          %1379 = vmatpush2.bf16.msra.mxu0 0
          %1380 = vmatprep.mubr.bf16.mxu0 0
          %1381 = vmatmul.mubr.bf16.gmra.mxu0 %v1288
          %v1382 = vpop.f32.mrf.mxu0
          %v1383 = vadd.f32 %v1299, %v1382
          %v1384 = vpop.f32.mrf.mxu0
          %v1385 = vpop.f32.mrf.mxu0
          %v1386 = vadd.f32 %v1299, %v1385
          %v1387 = vpop.f32.mrf.mxu0
          %1388 = vmatprep.mubr.bf16.mxu0 0
          %1389 = vmatmul.mubr.bf16.gmra.mxu0 %v1289
          %v1390 = vpop.f32.mrf.mxu0
          %v1391 = vadd.f32 %v1299, %v1390
          %v1392 = vpop.f32.mrf.mxu0
          %v1393 = vpop.f32.mrf.mxu0
          %v1394 = vadd.f32 %v1299, %v1393
          %v1395 = vpop.f32.mrf.mxu0
          %1396 = vmatprep.mubr.bf16.mxu0 0
          %1397 = vmatmul.mubr.bf16.gmra.mxu0 %v1290
          %v1398 = vpop.f32.mrf.mxu0
          %v1399 = vadd.f32 %v1299, %v1398
          %v1400 = vpop.f32.mrf.mxu0
          %v1401 = vpop.f32.mrf.mxu0
          %v1402 = vadd.f32 %v1299, %v1401
          %v1403 = vpop.f32.mrf.mxu0
          %1404 = vmatprep.mubr.bf16.mxu0 0
          %1405 = vmatmul.mubr.bf16.gmra.mxu0 %v1291
          %v1406 = vpop.f32.mrf.mxu0
          %v1407 = vadd.f32 %v1299, %v1406
          %v1408 = vpop.f32.mrf.mxu0
          %v1409 = vpop.f32.mrf.mxu0
          %v1410 = vadd.f32 %v1299, %v1409
          %v1411 = vpop.f32.mrf.mxu0
          %1412 = vmatprep.mubr.bf16.mxu0 0
          %1413 = vmatmul.mubr.bf16.gmra.mxu0 %v1292
          %v1414 = vpop.f32.mrf.mxu0
          %v1415 = vadd.f32 %v1299, %v1414
          %v1416 = vpop.f32.mrf.mxu0
          %v1417 = vpop.f32.mrf.mxu0
          %v1418 = vadd.f32 %v1299, %v1417
          %v1419 = vpop.f32.mrf.mxu0
          %1420 = vmatprep.mubr.bf16.mxu0 0
          %1421 = vmatmul.mubr.bf16.gmra.mxu0 %v1293
          %v1422 = vpop.f32.mrf.mxu0
          %v1423 = vadd.f32 %v1299, %v1422
          %v1424 = vpop.f32.mrf.mxu0
          %v1425 = vpop.f32.mrf.mxu0
          %v1426 = vadd.f32 %v1299, %v1425
          %v1427 = vpop.f32.mrf.mxu0
          %1428 = vmatprep.mubr.bf16.mxu0 0
          %1429 = vmatmul.mubr.bf16.gmra.mxu0 %v1294
          %v1430 = vpop.f32.mrf.mxu0
          %v1431 = vadd.f32 %v1299, %v1430
          %v1432 = vpop.f32.mrf.mxu0
          %v1433 = vpop.f32.mrf.mxu0
          %v1434 = vadd.f32 %v1299, %v1433
          %v1435 = vpop.f32.mrf.mxu0
          %1436 = vmatprep.mubr.bf16.mxu0 0
          %1437 = vmatmul.mubr.bf16.gmra.mxu0 %v1295
          %v1438 = vpop.f32.mrf.mxu0
          %v1439 = vadd.f32 %v1299, %v1438
          %v1440 = vpop.f32.mrf.mxu0
          %v1441 = vpop.f32.mrf.mxu0
          %v1442 = vadd.f32 %v1299, %v1441
          %v1443 = vpop.f32.mrf.mxu0
          %1444 = vdwg.mxu0
          %vm1445 = vcmp.gt.f32.partialorder %v1383, 0.0
          %vm1446 = vcmp.gt.f32.partialorder %v1386, 0.0
          %vm1447 = vcmp.gt.f32.partialorder %v1391, 0.0
          %vm1448 = vcmp.gt.f32.partialorder %v1394, 0.0
          %vm1449 = vcmp.gt.f32.partialorder %v1399, 0.0
          %vm1450 = vcmp.gt.f32.partialorder %v1402, 0.0
          %vm1451 = vcmp.gt.f32.partialorder %v1407, 0.0
          %vm1452 = vcmp.gt.f32.partialorder %v1410, 0.0
          %vm1453 = vcmp.gt.f32.partialorder %v1415, 0.0
          %vm1454 = vcmp.gt.f32.partialorder %v1418, 0.0
          %vm1455 = vcmp.gt.f32.partialorder %v1423, 0.0
          %vm1456 = vcmp.gt.f32.partialorder %v1426, 0.0
          %vm1457 = vcmp.gt.f32.partialorder %v1431, 0.0
          %vm1458 = vcmp.gt.f32.partialorder %v1434, 0.0
          %vm1459 = vcmp.gt.f32.partialorder %v1439, 0.0
          %vm1460 = vcmp.gt.f32.partialorder %v1442, 0.0
          %v1461 = vmul.f32 %v1383, 0.01
          %v1462 = vmul.f32 %v1386, 0.01
          %v1463 = vmul.f32 %v1391, 0.01
          %v1464 = vmul.f32 %v1394, 0.01
          %v1465 = vmul.f32 %v1399, 0.01
          %v1466 = vmul.f32 %v1402, 0.01
          %v1467 = vmul.f32 %v1407, 0.01
          %v1468 = vmul.f32 %v1410, 0.01
          %v1469 = vmul.f32 %v1415, 0.01
          %v1470 = vmul.f32 %v1418, 0.01
          %v1471 = vmul.f32 %v1423, 0.01
          %v1472 = vmul.f32 %v1426, 0.01
          %v1473 = vmul.f32 %v1431, 0.01
          %v1474 = vmul.f32 %v1434, 0.01
          %v1475 = vmul.f32 %v1439, 0.01
          %v1476 = vmul.f32 %v1442, 0.01
          %v1477 = vsel %vm1445, %v1383, %v1461
          %v1478 = vsel %vm1446, %v1386, %v1462
          %v1479 = vsel %vm1447, %v1391, %v1463
          %v1480 = vsel %vm1448, %v1394, %v1464
          %v1481 = vsel %vm1449, %v1399, %v1465
          %v1482 = vsel %vm1450, %v1402, %v1466
          %v1483 = vsel %vm1451, %v1407, %v1467
          %v1484 = vsel %vm1452, %v1410, %v1468
          %v1485 = vsel %vm1453, %v1415, %v1469
          %v1486 = vsel %vm1454, %v1418, %v1470
          %v1487 = vsel %vm1455, %v1423, %v1471
          %v1488 = vsel %vm1456, %v1426, %v1472
          %v1489 = vsel %vm1457, %v1431, %v1473
          %v1490 = vsel %vm1458, %v1434, %v1474
          %v1491 = vsel %vm1459, %v1439, %v1475
          %v1492 = vsel %vm1460, %v1442, %v1476
          %v1493 = vpack.c.bf16 %v1478, %v1477
          %v1494 = vpack.c.bf16 %v1480, %v1479
          %v1495 = vpack.c.bf16 %v1482, %v1481
          %v1496 = vpack.c.bf16 %v1484, %v1483
          %v1497 = vpack.c.bf16 %v1486, %v1485
          %v1498 = vpack.c.bf16 %v1488, %v1487
          %v1499 = vpack.c.bf16 %v1490, %v1489
          %v1500 = vpack.c.bf16 %v1492, %v1491
          %v1501 = vlaneseq
          %v1502 = vshrl.u32 %v1501, 7
          %v1503 = vsub.s32 0, %v1502
          %v1504 = vrot.slane %v881, %v1503
          %v1521 = vunpack.c.l.b16 %v863
          %v1522 = vunpack.c.l.b16 %v864
          %v1523 = vunpack.c.l.b16 %v865
          %v1524 = vunpack.c.l.b16 %v866
          %v1525 = vunpack.c.l.b16 %v867
          %v1526 = vunpack.c.l.b16 %v868
          %v1527 = vunpack.c.l.b16 %v869
          %v1528 = vunpack.c.l.b16 %v870
          %v1529 = vunpack.c.l.b16 %v871
          %v1530 = vunpack.c.l.b16 %v872
          %v1531 = vunpack.c.l.b16 %v873
          %v1532 = vunpack.c.l.b16 %v874
          %v1533 = vunpack.c.l.b16 %v875
          %v1534 = vunpack.c.l.b16 %v876
          %v1535 = vunpack.c.l.b16 %v877
          %v1536 = vunpack.c.l.b16 %v878
          %v1537 = vpack.c.b16 %v1522, %v1521
          %v1538 = vpack.c.b16 %v1524, %v1523
          %v1539 = vpack.c.b16 %v1526, %v1525
          %v1540 = vpack.c.b16 %v1528, %v1527
          %v1541 = vpack.c.b16 %v1530, %v1529
          %v1542 = vpack.c.b16 %v1532, %v1531
          %v1543 = vpack.c.b16 %v1534, %v1533
          %v1544 = vpack.c.b16 %v1536, %v1535
          %1553 = vmatprep.subr.bf16.mxu0 0
          %1554 = vmatpush1.bf16.msra.mxu0 %v1544
          %1555 = vmatprep.subr.bf16.mxu0 0
          %1556 = vmatpush1.bf16.msra.mxu0 %v1543
          %1557 = vmatprep.subr.bf16.mxu0 0
          %1558 = vmatpush1.bf16.msra.mxu0 %v1542
          %1559 = vmatprep.subr.bf16.mxu0 0
          %1560 = vmatpush1.bf16.msra.mxu0 %v1541
          %1561 = vmatprep.subr.bf16.mxu0 0
          %1562 = vmatpush1.bf16.msra.mxu0 %v1540
          %1563 = vmatprep.subr.bf16.mxu0 0
          %1564 = vmatpush1.bf16.msra.mxu0 %v1539
          %1565 = vmatprep.subr.bf16.mxu0 0
          %1566 = vmatpush1.bf16.msra.mxu0 %v1538
          %1567 = vmatprep.subr.bf16.mxu0 0
          %1568 = vmatpush1.bf16.msra.mxu0 %v1537
          %1569 = vmatprep.subr.bf16.mxu0 0
          %1570 = vmatpush2.bf16.msra.mxu0 0
          %1571 = vmatprep.subr.bf16.mxu0 0
          %1572 = vmatpush2.bf16.msra.mxu0 0
          %1573 = vmatprep.subr.bf16.mxu0 0
          %1574 = vmatpush2.bf16.msra.mxu0 0
          %1575 = vmatprep.subr.bf16.mxu0 0
          %1576 = vmatpush2.bf16.msra.mxu0 0
          %1577 = vmatprep.subr.bf16.mxu0 0
          %1578 = vmatpush2.bf16.msra.mxu0 0
          %1579 = vmatprep.subr.bf16.mxu0 0
          %1580 = vmatpush2.bf16.msra.mxu0 0
          %1581 = vmatprep.subr.bf16.mxu0 0
          %1582 = vmatpush2.bf16.msra.mxu0 0
          %1583 = vmatprep.subr.bf16.mxu0 0
          %1584 = vmatpush2.bf16.msra.mxu0 0
          %1585 = vmatprep.mubr.bf16.mxu0 0
          %1586 = vmatmul.mubr.bf16.gmra.mxu0 %v1493
          %v1587 = vpop.f32.mrf.mxu0
          %v1588 = vadd.f32 %v1504, %v1587
          %v1589 = vpop.f32.mrf.mxu0
          %v1590 = vpop.f32.mrf.mxu0
          %v1591 = vadd.f32 %v1504, %v1590
          %v1592 = vpop.f32.mrf.mxu0
          %1593 = vmatprep.mubr.bf16.mxu0 0
          %1594 = vmatmul.mubr.bf16.gmra.mxu0 %v1494
          %v1595 = vpop.f32.mrf.mxu0
          %v1596 = vadd.f32 %v1504, %v1595
          %v1597 = vpop.f32.mrf.mxu0
          %v1598 = vpop.f32.mrf.mxu0
          %v1599 = vadd.f32 %v1504, %v1598
          %v1600 = vpop.f32.mrf.mxu0
          %1601 = vmatprep.mubr.bf16.mxu0 0
          %1602 = vmatmul.mubr.bf16.gmra.mxu0 %v1495
          %v1603 = vpop.f32.mrf.mxu0
          %v1604 = vadd.f32 %v1504, %v1603
          %v1605 = vpop.f32.mrf.mxu0
          %v1606 = vpop.f32.mrf.mxu0
          %v1607 = vadd.f32 %v1504, %v1606
          %v1608 = vpop.f32.mrf.mxu0
          %1609 = vmatprep.mubr.bf16.mxu0 0
          %1610 = vmatmul.mubr.bf16.gmra.mxu0 %v1496
          %v1611 = vpop.f32.mrf.mxu0
          %v1612 = vadd.f32 %v1504, %v1611
          %v1613 = vpop.f32.mrf.mxu0
          %v1614 = vpop.f32.mrf.mxu0
          %v1615 = vadd.f32 %v1504, %v1614
          %v1616 = vpop.f32.mrf.mxu0
          %1617 = vmatprep.mubr.bf16.mxu0 0
          %1618 = vmatmul.mubr.bf16.gmra.mxu0 %v1497
          %v1619 = vpop.f32.mrf.mxu0
          %v1620 = vadd.f32 %v1504, %v1619
          %v1621 = vpop.f32.mrf.mxu0
          %v1622 = vpop.f32.mrf.mxu0
          %v1623 = vadd.f32 %v1504, %v1622
          %v1624 = vpop.f32.mrf.mxu0
          %1625 = vmatprep.mubr.bf16.mxu0 0
          %1626 = vmatmul.mubr.bf16.gmra.mxu0 %v1498
          %v1627 = vpop.f32.mrf.mxu0
          %v1628 = vadd.f32 %v1504, %v1627
          %v1629 = vpop.f32.mrf.mxu0
          %v1630 = vpop.f32.mrf.mxu0
          %v1631 = vadd.f32 %v1504, %v1630
          %v1632 = vpop.f32.mrf.mxu0
          %1633 = vmatprep.mubr.bf16.mxu0 0
          %1634 = vmatmul.mubr.bf16.gmra.mxu0 %v1499
          %v1635 = vpop.f32.mrf.mxu0
          %v1636 = vadd.f32 %v1504, %v1635
          %v1637 = vpop.f32.mrf.mxu0
          %v1638 = vpop.f32.mrf.mxu0
          %v1639 = vadd.f32 %v1504, %v1638
          %v1640 = vpop.f32.mrf.mxu0
          %1641 = vmatprep.mubr.bf16.mxu0 0
          %1642 = vmatmul.mubr.bf16.gmra.mxu0 %v1500
          %v1643 = vpop.f32.mrf.mxu0
          %v1644 = vadd.f32 %v1504, %v1643
          %v1645 = vpop.f32.mrf.mxu0
          %v1646 = vpop.f32.mrf.mxu0
          %v1647 = vadd.f32 %v1504, %v1646
          %v1648 = vpop.f32.mrf.mxu0
          %1649 = vdwg.mxu0
          %1650 = vst [vmem:[#allocation2] sm:$0xff] %v1588
          %1651 = vst [vmem:[#allocation2 + $0x8] sm:$0xff] %v1591
          %1652 = vst [vmem:[#allocation2 + $0x10] sm:$0xff] %v1596
          %1653 = vst [vmem:[#allocation2 + $0x18] sm:$0xff] %v1599
          %1654 = vst [vmem:[#allocation2 + $0x20] sm:$0xff] %v1604
          %1655 = vst [vmem:[#allocation2 + $0x28] sm:$0xff] %v1607
          %1656 = vst [vmem:[#allocation2 + $0x30] sm:$0xff] %v1612
          %1657 = vst [vmem:[#allocation2 + $0x38] sm:$0xff] %v1615
          %1658 = vst [vmem:[#allocation2 + $0x40] sm:$0xff] %v1620
          %1659 = vst [vmem:[#allocation2 + $0x48] sm:$0xff] %v1623
          %1660 = vst [vmem:[#allocation2 + $0x50] sm:$0xff] %v1628
          %1661 = vst [vmem:[#allocation2 + $0x58] sm:$0xff] %v1631
          %1662 = vst [vmem:[#allocation2 + $0x60] sm:$0xff] %v1636
          %1663 = vst [vmem:[#allocation2 + $0x68] sm:$0xff] %v1639
          %1664 = vst [vmem:[#allocation2 + $0x70] sm:$0xff] %v1644
          %1665 = vst [vmem:[#allocation2 + $0x78] sm:$0xff] %v1647
          %1666 = vst [vmem:[#allocation8] sm:$0xff] %v1588
          %1667 = vst [vmem:[#allocation8 + $0x8] sm:$0xff] %v1591
          %1668 = vst [vmem:[#allocation8 + $0x10] sm:$0xff] %v1596
          %1669 = vst [vmem:[#allocation8 + $0x18] sm:$0xff] %v1599
          %1670 = vst [vmem:[#allocation8 + $0x20] sm:$0xff] %v1604
          %1671 = vst [vmem:[#allocation8 + $0x28] sm:$0xff] %v1607
          %1672 = vst [vmem:[#allocation8 + $0x30] sm:$0xff] %v1612
          %1673 = vst [vmem:[#allocation8 + $0x38] sm:$0xff] %v1615
          %1674 = vst [vmem:[#allocation8 + $0x40] sm:$0xff] %v1620
          %1675 = vst [vmem:[#allocation8 + $0x48] sm:$0xff] %v1623
          %1676 = vst [vmem:[#allocation8 + $0x50] sm:$0xff] %v1628
          %1677 = vst [vmem:[#allocation8 + $0x58] sm:$0xff] %v1631
          %1678 = vst [vmem:[#allocation8 + $0x60] sm:$0xff] %v1636
          %1679 = vst [vmem:[#allocation8 + $0x68] sm:$0xff] %v1639
          %1680 = vst [vmem:[#allocation8 + $0x70] sm:$0xff] %v1644
          %1681 = vst [vmem:[#allocation8 + $0x78] sm:$0xff] %v1647
        $region60: #{tpu_custom_call.1} parent=39 // pred_fallthru
          _
        // Predicated region
        $region61: #{tpu_custom_call.1} parent=39 // pred_check
          %p1682 = pneg %p176
        $region62: #{tpu_custom_call.1} parent=39 // pred_check_branch
          %1684 = sbr.rel (%p1682) target = $region64
        $region63: #{tpu_custom_call.1} parent=39 // pred_region
          %s1686 = ssub.s32 2048, 2048
          %1687 = vsyncadd [#allocation7], %s1686
          %s1688 = sshll.u32 [#allocation8], 4
          %s1689 = int_to_ptr.vmem [resolvable:$true] %s1688
          %1694 = dma.vmem_to_hbm [thread:$0]  %s1689, 2048, %s6, [#allocation7], 128, 128, 8
        $region64: #{tpu_custom_call.1} parent=39 // pred_fallthru
          _
        // Predicated region
        $region65: #{tpu_custom_call.1} parent=39 // pred_check
          %p1695 = pneg %p176
        $region66: #{tpu_custom_call.1} parent=39 // pred_check_branch
          %1697 = sbr.rel (%p1695) target = $region68
        $region67: #{tpu_custom_call.1} parent=39 // pred_region
          %1698 = dma.done [#allocation7], 2048
        $region68: #{tpu_custom_call.1} parent=39 // pred_fallthru
          _
      $region40: #{tpu_custom_call.1} parent=5 // pred_fallthru
        _
      %p1699 = scmp.le.s32.totalorder 2, %s16
      // Predicated region
      $region69: #{tpu_custom_call.1} parent=5 // pred_check
        %p1700 = pneg %p1699
      $region70: #{tpu_custom_call.1} parent=5 // pred_check_branch
        %1702 = sbr.rel (%p1700) target = $region72
      $region71: #{tpu_custom_call.1} parent=5 // pred_region
        %s1703 = ssub.s32 %s16, 2
      $region72: #{tpu_custom_call.1} parent=5 // pred_fallthru
        _
    $region6: #{tpu_custom_call.1} parent=1 // loop_footer
      %s20 = sadd.s32 1, %s16
    $region7: #{tpu_custom_call.1} parent=1 // loop_footer_branch
      %15 = sbr.rel target = $region3
    $region8: #{tpu_custom_call.1} parent=1 // loop_exit
      _
    %1704 = vsyncpa [#allocation6], 1
    %s1705 = scalar_lea.sflag [#allocation6], 1
    %1706 = vsyncpa %s1705, 1
    %1707 = vsyncpa [#allocation7], 1
    %s1708 = scalar_lea.sflag [#allocation7], 1
    %1709 = vsyncpa %s1708, 1
  %1710 = vsyncmov [#allocation4]
  %s1711 = vpop.sfrf %1710
  %p1712 = scmp.eq.s32.totalorder %s1711, 0
  %p1713 = pneg %p1712
  %1715 = shalt.err (%p1713)

</llo_original>
